<compile_context>
chip_gen: v6e
topology: v6e:2x2x1
jax: 0.10.0
libtpu: 0.0.40
codegen_flags: <defaults>
</compile_context>

<pallas_src>
import jax
import jax.numpy as jnp
from jax.experimental import pallas as pl
from jax.experimental.pallas import tpu as pltpu

BN_EPS = 1e-5
LANE = 128


# ----------------------------- glue (plain JAX) -----------------------------
def build_norm_adj(edge_index, edge_weight, num_nodes):
    """Dense normalized adjacency A such that A @ x == DGCNConv.forward(x, ...).

    Mirrors gcn_norm with add_self_loops=True, improved=False:
      - append self loops with weight 1.0 (example edges contain no self loops)
      - deg[j]      = sum_{e: col(e)==j} w(e)
      - norm_w(e)   = deg^{-1/2}[row] * w * deg^{-1/2}[col]
      - out[col]   += norm_w * x[row]   =>   A[col, row] = norm_w
    """
    row, col = edge_index[0], edge_index[1]
    if edge_weight is None:
        edge_weight = jnp.ones(row.shape, dtype=jnp.float32)
    loop = jnp.arange(num_nodes, dtype=row.dtype)
    row = jnp.concatenate([row, loop])
    col = jnp.concatenate([col, loop])
    w = jnp.concatenate([edge_weight.astype(jnp.float32),
                         jnp.ones((num_nodes,), dtype=jnp.float32)])
    deg = jnp.zeros((num_nodes,), dtype=jnp.float32).at[col].add(w)
    dinv = jnp.where(deg > 0, jax.lax.rsqrt(deg), 0.0)
    norm_w = dinv[row] * w * dinv[col]
    adj = jnp.zeros((num_nodes, num_nodes), dtype=jnp.float32)
    adj = adj.at[col, row].add(norm_w)
    return adj


# ------------------------------ Pallas kernel -------------------------------
def _symreg_kernel(x_ref, a_ref, w1_ref, w2b_ref, cwb_ref,
                   g1_ref, be1_ref, g2_ref, be2_ref, cb_ref, o_ref):
    f32 = jnp.float32
    bf16 = jnp.bfloat16
    n, op = o_ref.shape            # nodes, padded out width (lane-dense)

    # --- lin1 (no bias): [N, Fp] @ [Fp, Hp] -> f32 accumulation ---
    h = jnp.dot(x_ref[...], w1_ref[...], preferred_element_type=f32)

    # --- 4 GCN propagations fused: [4N, N] @ [N, Hp].
    # bias1 add dropped: a per-column constant is exactly cancelled by the
    # batch-statistics mean subtraction of the following BatchNorm.
    hp = jnp.dot(a_ref[...], h.astype(bf16), preferred_element_type=f32)

    # --- per-branch BN1 + ReLU, accumulate lin2: h2 = sum_i relu(bn(x_i)) @ W2_i
    h2 = jnp.zeros((n, op), f32)
    for i in range(4):
        xi = hp[i * n:(i + 1) * n, :]                       # tile-aligned slice
        mean = jnp.mean(xi, axis=0, keepdims=True)
        var = jnp.mean((xi - mean) ** 2, axis=0, keepdims=True)
        xn = (xi - mean) * jax.lax.rsqrt(var + BN_EPS) * g1_ref[i] + be1_ref[i]
        xr = jnp.maximum(xn, 0.0)
        h2 = h2 + jnp.dot(xr.astype(bf16), w2b_ref[i],
                          preferred_element_type=f32)

    # --- second propagation stage, fused again (bias2 dropped, same identity)
    hp2 = jnp.dot(a_ref[...], h2.astype(bf16), preferred_element_type=f32)

    # --- per-branch BN2, accumulate 1x1 conv: out = sum_i bn(y_i) @ Wc_i + b
    out = jnp.zeros((n, op), f32)
    for i in range(4):
        yi = hp2[i * n:(i + 1) * n, :]
        mean = jnp.mean(yi, axis=0, keepdims=True)
        var = jnp.mean((yi - mean) ** 2, axis=0, keepdims=True)
        yn = (yi - mean) * jax.lax.rsqrt(var + BN_EPS) * g2_ref[i] + be2_ref[i]
        out = out + jnp.dot(yn.astype(bf16), cwb_ref[i],
                            preferred_element_type=f32)
    o_ref[...] = (out + cb_ref[...]).astype(o_ref.dtype)


# --------------------------- parameter packing -------------------------------
def _rup(v, m):
    return ((v + m - 1) // m) * m


def _pad2(a, rows, cols):
    return jnp.pad(a, ((0, rows - a.shape[0]), (0, cols - a.shape[1])))


def init_params(key, input_dim, nhid, out_dim):
    """Parameters in PyTorch layout (freshly-constructed module semantics)."""
    ks = jax.random.split(key, 4)
    return {
        "lin1_w": jax.random.normal(ks[0], (nhid, input_dim), jnp.float32) * 0.1,
        "lin2_w": jax.random.normal(ks[1], (out_dim, 4 * nhid), jnp.float32) * 0.1,
        "conv_w": jax.random.normal(ks[2], (out_dim, 4 * out_dim), jnp.float32) * 0.1,
        "conv_b": jax.random.normal(ks[3], (out_dim,), jnp.float32) * 0.01,
        # bias1/bias2 (zeros-initialized in the module) are not passed to the
        # kernel: with training-mode batch-statistics BN right after, any
        # per-column constant bias cancels exactly.
        "bias1": jnp.zeros((1, nhid), jnp.float32),
        "bias2": jnp.zeros((1, out_dim), jnp.float32),
        "bn1_gamma": jnp.ones((4 * nhid,), jnp.float32),
        "bn1_beta": jnp.zeros((4 * nhid,), jnp.float32),
        "bn2_gamma": jnp.ones((4 * out_dim,), jnp.float32),
        "bn2_beta": jnp.zeros((4 * out_dim,), jnp.float32),
    }


def pack_params(params, input_dim, nhid, out_dim, lane=LANE):
    """Split concat-weights into per-branch blocks, pad lanes to 128, cast bf16."""
    fp, hp, op = _rup(input_dim, lane), _rup(nhid, lane), _rup(out_dim, lane)
    w1_t = params["lin1_w"].T                     # [input_dim, nhid]
    w2_t = params["lin2_w"].T                     # [4*nhid, out_dim]
    cw_t = params["conv_w"].T                     # [4*out_dim, out_dim]
    w2_blocks = jnp.stack(
        [_pad2(w2_t[i * nhid:(i + 1) * nhid], hp, op) for i in range(4)])
    cw_blocks = jnp.stack(
        [_pad2(cw_t[i * out_dim:(i + 1) * out_dim], op, op) for i in range(4)])

    def bn_split(v, width, padded):
        return jnp.stack([jnp.pad(v[i * width:(i + 1) * width],
                                  (0, padded - width)) for i in range(4)])[:, None, :]

    return {
        "dims": (fp, hp, op),
        "w1": _pad2(w1_t, fp, hp).astype(jnp.bfloat16),          # [Fp, Hp]
        "w2_blocks": w2_blocks.astype(jnp.bfloat16),             # [4, Hp, Op]
        "cw_blocks": cw_blocks.astype(jnp.bfloat16),             # [4, Op, Op]
        "g1": bn_split(params["bn1_gamma"], nhid, hp),           # [4, 1, Hp]
        "be1": bn_split(params["bn1_beta"], nhid, hp),
        "g2": bn_split(params["bn2_gamma"], out_dim, op),        # [4, 1, Op]
        "be2": bn_split(params["bn2_beta"], out_dim, op),
        "cb": jnp.pad(params["conv_b"], (0, op - out_dim))[None, :],  # [1, Op]
    }


# --------------------------------- wrapper -----------------------------------
def symreg_forward(x, adjs, packed, out_dim):
    """x: [N, input_dim] f32; adjs: 4 dense [N, N] normalized adjacencies."""
    n = x.shape[0]
    assert n % 8 == 0, "node count must be a multiple of 8 (sublane alignment)"
    fp, hp, op = packed["dims"]

    x_p = jnp.pad(x, ((0, 0), (0, fp - x.shape[1]))).astype(jnp.bfloat16)
    # Stack the 4 adjacencies row-wise so each propagation stage is one matmul.
    a_stack = jnp.concatenate(adjs, axis=0).astype(jnp.bfloat16)   # [4N, N]

    operands = (x_p, a_stack, packed["w1"], packed["w2_blocks"],
                packed["cw_blocks"], packed["g1"], packed["be1"],
                packed["g2"], packed["be2"], packed["cb"])
    vmem = pl.BlockSpec(memory_space=pltpu.MemorySpace.VMEM)

    # TODO(synk): for large N, row-tile the propagation over a grid (stream the
    #   [4N, N] adjacency from HBM, two-phase BN: accumulate column sum/sumsq in
    #   scratch across row tiles, finalize with pl.when) and mark the row axis
    #   "parallel" for v7x megacore; unnecessary at these toy sizes.
    # TODO(synk): if many tiny graphs are processed, batch them over a leading
    #   grid axis in one pallas_call to amortize launch/DMA overhead.
    out = pl.pallas_call(
        _symreg_kernel,
        out_shape=jax.ShapeDtypeStruct((n, op), jnp.float32),
        in_specs=[vmem] * len(operands),
        out_specs=vmem,
    )(*operands)
    return out[:, :out_dim]


# ------------------------------- example data --------------------------------
def make_edges(key, num_nodes, num_edges):
    """Random directed edges with no self loops."""
    k1, k2 = jax.random.split(key)
    row = jax.random.randint(k1, (num_edges,), 0, num_nodes)
    off = jax.random.randint(k2, (num_edges,), 1, num_nodes)
    col = (row + off) % num_nodes
    return jnp.stack([row, col]).astype(jnp.int32)


# ----------------------------------- main -------------------------------------
if __name__ == "__main__":
    N, INPUT_DIM, NHID, OUT_DIM, E = 16, 32, 16, 8, 40

    key = jax.random.PRNGKey(0)
    kx, ke1, ke2, ke3, ke4, kw1, kw2, kp = jax.random.split(key, 8)

    x = jax.random.normal(kx, (N, INPUT_DIM), jnp.float32)

    edge_in = make_edges(ke1, N, E)
    edge_out = make_edges(ke2, N, E)
    edge_qin_in = make_edges(ke3, N, E)
    edge_qin_out = make_edges(ke4, N, E)
    in_w = jax.random.uniform(kw1, (E,), jnp.float32, 0.1, 1.0)
    out_w = jax.random.uniform(kw2, (E,), jnp.float32, 0.1, 1.0)

    # gcn_norm (self loops + symmetric normalization) -> dense adjacency (glue)
    adjs = (
        build_norm_adj(edge_in, in_w, N),
        build_norm_adj(edge_out, out_w, N),
        build_norm_adj(edge_qin_in, None, N),
        build_norm_adj(edge_qin_out, None, N),
    )

    params = init_params(kp, INPUT_DIM, NHID, OUT_DIM)
    packed = pack_params(params, INPUT_DIM, NHID, OUT_DIM)

    out = symreg_forward(x, adjs, packed, OUT_DIM)
    out = jax.block_until_ready(out)
    assert out.shape == (N, OUT_DIM)
    assert bool(jnp.all(jnp.isfinite(out)))
    print("KERNEL_OK")
</pallas_src>

<mosaic_0001>
module attributes {stable_mosaic.version = 11 : i64} {
  func.func @_symreg_kernel(%arg0: memref<16x128xbf16, #tpu.memory_space<vmem>>, %arg1: memref<64x16xbf16, #tpu.memory_space<vmem>>, %arg2: memref<128x128xbf16, #tpu.memory_space<vmem>>, %arg3: memref<4x128x128xbf16, #tpu.memory_space<vmem>>, %arg4: memref<4x128x128xbf16, #tpu.memory_space<vmem>>, %arg5: memref<4x1x128xf32, #tpu.memory_space<vmem>>, %arg6: memref<4x1x128xf32, #tpu.memory_space<vmem>>, %arg7: memref<4x1x128xf32, #tpu.memory_space<vmem>>, %arg8: memref<4x1x128xf32, #tpu.memory_space<vmem>>, %arg9: memref<1x128xf32, #tpu.memory_space<vmem>>, %arg10: memref<16x128xf32, #tpu.memory_space<vmem>>) attributes {dimension_semantics = [], scalar_prefetch = 0 : i64, scratch_operands = 0 : i64, tpu.core_type = #tpu.core_type<tc>} {
    %c0 = arith.constant 0 : index
    %c0_0 = arith.constant 0 : index
    %0 = vector.load %arg0[%c0, %c0_0] : memref<16x128xbf16, #tpu.memory_space<vmem>>, vector<16x128xbf16>
    %c0_1 = arith.constant 0 : index
    %c0_2 = arith.constant 0 : index
    %1 = vector.load %arg2[%c0_1, %c0_2] : memref<128x128xbf16, #tpu.memory_space<vmem>>, vector<128x128xbf16>
    %cst = arith.constant dense<0.000000e+00> : vector<16x128xf32>
    %2 = tpu.matmul %0, %1, %cst {dimension_numbers = #tpu.dot_dimension_numbers<[1], [0], [0], [1], [0, 0, 1, 1], [], []>} : vector<16x128xbf16>, vector<128x128xbf16>, vector<16x128xf32> -> vector<16x128xf32>
    %c0_3 = arith.constant 0 : index
    %c0_4 = arith.constant 0 : index
    %3 = vector.load %arg1[%c0_3, %c0_4] : memref<64x16xbf16, #tpu.memory_space<vmem>>, vector<64x16xbf16>
    %4 = arith.truncf %2 : vector<16x128xf32> to vector<16x128xbf16>
    %cst_5 = arith.constant dense<0.000000e+00> : vector<64x128xf32>
    %5 = tpu.matmul %3, %4, %cst_5 {dimension_numbers = #tpu.dot_dimension_numbers<[1], [0], [0], [1], [0, 0, 1, 1], [], []>} : vector<64x16xbf16>, vector<16x128xbf16>, vector<64x128xf32> -> vector<64x128xf32>
    %cst_6 = arith.constant 0.000000e+00 : f32
    %6 = vector.broadcast %cst_6 : f32 to vector<16x128xf32>
    %7 = vector.extract_strided_slice %5 {offsets = [0, 0], sizes = [16, 128], strides = [1, 1]} : vector<64x128xf32> to vector<16x128xf32>
    %cst_7 = arith.constant dense<0.000000e+00> : vector<128xf32>
    %8 = vector.multi_reduction <add>, %7, %cst_7 [0] : vector<16x128xf32> to vector<128xf32>
    %9 = vector.shape_cast %8 : vector<128xf32> to vector<1x128xf32>
    %cst_8 = arith.constant 1.600000e+01 : f32
    %10 = vector.broadcast %cst_8 : f32 to vector<1x128xf32>
    %11 = arith.divf %9, %10 : vector<1x128xf32>
    %12 = vector.broadcast %11 : vector<1x128xf32> to vector<16x128xf32>
    %13 = arith.subf %7, %12 : vector<16x128xf32>
    %14 = arith.mulf %13, %13 : vector<16x128xf32>
    %cst_9 = arith.constant dense<0.000000e+00> : vector<128xf32>
    %15 = vector.multi_reduction <add>, %14, %cst_9 [0] : vector<16x128xf32> to vector<128xf32>
    %16 = vector.shape_cast %15 : vector<128xf32> to vector<1x128xf32>
    %cst_10 = arith.constant 1.600000e+01 : f32
    %17 = vector.broadcast %cst_10 : f32 to vector<1x128xf32>
    %18 = arith.divf %16, %17 : vector<1x128xf32>
    %19 = vector.broadcast %11 : vector<1x128xf32> to vector<16x128xf32>
    %20 = arith.subf %7, %19 : vector<16x128xf32>
    %cst_11 = arith.constant 9.99999974E-6 : f32
    %21 = vector.broadcast %cst_11 : f32 to vector<1x128xf32>
    %22 = arith.addf %18, %21 : vector<1x128xf32>
    %23 = math.rsqrt %22 : vector<1x128xf32>
    %24 = vector.broadcast %23 : vector<1x128xf32> to vector<16x128xf32>
    %25 = arith.mulf %20, %24 : vector<16x128xf32>
    %c0_12 = arith.constant 0 : index
    %c0_13 = arith.constant 0 : index
    %c0_14 = arith.constant 0 : index
    %26 = vector.load %arg5[%c0_12, %c0_13, %c0_14] : memref<4x1x128xf32, #tpu.memory_space<vmem>>, vector<1x1x128xf32>
    %27 = vector.shape_cast %26 : vector<1x1x128xf32> to vector<1x128xf32>
    %28 = vector.broadcast %27 : vector<1x128xf32> to vector<16x128xf32>
    %29 = arith.mulf %25, %28 : vector<16x128xf32>
    %c0_15 = arith.constant 0 : index
    %c0_16 = arith.constant 0 : index
    %c0_17 = arith.constant 0 : index
    %30 = vector.load %arg6[%c0_15, %c0_16, %c0_17] : memref<4x1x128xf32, #tpu.memory_space<vmem>>, vector<1x1x128xf32>
    %31 = vector.shape_cast %30 : vector<1x1x128xf32> to vector<1x128xf32>
    %32 = vector.broadcast %31 : vector<1x128xf32> to vector<16x128xf32>
    %33 = arith.addf %29, %32 : vector<16x128xf32>
    %cst_18 = arith.constant 0.000000e+00 : f32
    %34 = vector.broadcast %cst_18 : f32 to vector<16x128xf32>
    %35 = arith.maximumf %33, %34 : vector<16x128xf32>
    %36 = arith.truncf %35 : vector<16x128xf32> to vector<16x128xbf16>
    %c0_19 = arith.constant 0 : index
    %c0_20 = arith.constant 0 : index
    %c0_21 = arith.constant 0 : index
    %37 = vector.load %arg3[%c0_19, %c0_20, %c0_21] : memref<4x128x128xbf16, #tpu.memory_space<vmem>>, vector<1x128x128xbf16>
    %38 = vector.shape_cast %37 : vector<1x128x128xbf16> to vector<128x128xbf16>
    %cst_22 = arith.constant dense<0.000000e+00> : vector<16x128xf32>
    %39 = tpu.matmul %36, %38, %cst_22 {dimension_numbers = #tpu.dot_dimension_numbers<[1], [0], [0], [1], [0, 0, 1, 1], [], []>} : vector<16x128xbf16>, vector<128x128xbf16>, vector<16x128xf32> -> vector<16x128xf32>
    %40 = arith.addf %6, %39 : vector<16x128xf32>
    %41 = vector.extract_strided_slice %5 {offsets = [16, 0], sizes = [16, 128], strides = [1, 1]} : vector<64x128xf32> to vector<16x128xf32>
    %cst_23 = arith.constant dense<0.000000e+00> : vector<128xf32>
    %42 = vector.multi_reduction <add>, %41, %cst_23 [0] : vector<16x128xf32> to vector<128xf32>
    %43 = vector.shape_cast %42 : vector<128xf32> to vector<1x128xf32>
    %cst_24 = arith.constant 1.600000e+01 : f32
    %44 = vector.broadcast %cst_24 : f32 to vector<1x128xf32>
    %45 = arith.divf %43, %44 : vector<1x128xf32>
    %46 = vector.broadcast %45 : vector<1x128xf32> to vector<16x128xf32>
    %47 = arith.subf %41, %46 : vector<16x128xf32>
    %48 = arith.mulf %47, %47 : vector<16x128xf32>
    %cst_25 = arith.constant dense<0.000000e+00> : vector<128xf32>
    %49 = vector.multi_reduction <add>, %48, %cst_25 [0] : vector<16x128xf32> to vector<128xf32>
    %50 = vector.shape_cast %49 : vector<128xf32> to vector<1x128xf32>
    %cst_26 = arith.constant 1.600000e+01 : f32
    %51 = vector.broadcast %cst_26 : f32 to vector<1x128xf32>
    %52 = arith.divf %50, %51 : vector<1x128xf32>
    %53 = vector.broadcast %45 : vector<1x128xf32> to vector<16x128xf32>
    %54 = arith.subf %41, %53 : vector<16x128xf32>
    %cst_27 = arith.constant 9.99999974E-6 : f32
    %55 = vector.broadcast %cst_27 : f32 to vector<1x128xf32>
    %56 = arith.addf %52, %55 : vector<1x128xf32>
    %57 = math.rsqrt %56 : vector<1x128xf32>
    %58 = vector.broadcast %57 : vector<1x128xf32> to vector<16x128xf32>
    %59 = arith.mulf %54, %58 : vector<16x128xf32>
    %c1 = arith.constant 1 : index
    %c0_28 = arith.constant 0 : index
    %c0_29 = arith.constant 0 : index
    %60 = vector.load %arg5[%c1, %c0_28, %c0_29] : memref<4x1x128xf32, #tpu.memory_space<vmem>>, vector<1x1x128xf32>
    %61 = vector.shape_cast %60 : vector<1x1x128xf32> to vector<1x128xf32>
    %62 = vector.broadcast %61 : vector<1x128xf32> to vector<16x128xf32>
    %63 = arith.mulf %59, %62 : vector<16x128xf32>
    %c1_30 = arith.constant 1 : index
    %c0_31 = arith.constant 0 : index
    %c0_32 = arith.constant 0 : index
    %64 = vector.load %arg6[%c1_30, %c0_31, %c0_32] : memref<4x1x128xf32, #tpu.memory_space<vmem>>, vector<1x1x128xf32>
    %65 = vector.shape_cast %64 : vector<1x1x128xf32> to vector<1x128xf32>
    %66 = vector.broadcast %65 : vector<1x128xf32> to vector<16x128xf32>
    %67 = arith.addf %63, %66 : vector<16x128xf32>
    %cst_33 = arith.constant 0.000000e+00 : f32
    %68 = vector.broadcast %cst_33 : f32 to vector<16x128xf32>
    %69 = arith.maximumf %67, %68 : vector<16x128xf32>
    %70 = arith.truncf %69 : vector<16x128xf32> to vector<16x128xbf16>
    %c1_34 = arith.constant 1 : index
    %c0_35 = arith.constant 0 : index
    %c0_36 = arith.constant 0 : index
    %71 = vector.load %arg3[%c1_34, %c0_35, %c0_36] : memref<4x128x128xbf16, #tpu.memory_space<vmem>>, vector<1x128x128xbf16>
    %72 = vector.shape_cast %71 : vector<1x128x128xbf16> to vector<128x128xbf16>
    %cst_37 = arith.constant dense<0.000000e+00> : vector<16x128xf32>
    %73 = tpu.matmul %70, %72, %cst_37 {dimension_numbers = #tpu.dot_dimension_numbers<[1], [0], [0], [1], [0, 0, 1, 1], [], []>} : vector<16x128xbf16>, vector<128x128xbf16>, vector<16x128xf32> -> vector<16x128xf32>
    %74 = arith.addf %40, %73 : vector<16x128xf32>
    %75 = vector.extract_strided_slice %5 {offsets = [32, 0], sizes = [16, 128], strides = [1, 1]} : vector<64x128xf32> to vector<16x128xf32>
    %cst_38 = arith.constant dense<0.000000e+00> : vector<128xf32>
    %76 = vector.multi_reduction <add>, %75, %cst_38 [0] : vector<16x128xf32> to vector<128xf32>
    %77 = vector.shape_cast %76 : vector<128xf32> to vector<1x128xf32>
    %cst_39 = arith.constant 1.600000e+01 : f32
    %78 = vector.broadcast %cst_39 : f32 to vector<1x128xf32>
    %79 = arith.divf %77, %78 : vector<1x128xf32>
    %80 = vector.broadcast %79 : vector<1x128xf32> to vector<16x128xf32>
    %81 = arith.subf %75, %80 : vector<16x128xf32>
    %82 = arith.mulf %81, %81 : vector<16x128xf32>
    %cst_40 = arith.constant dense<0.000000e+00> : vector<128xf32>
    %83 = vector.multi_reduction <add>, %82, %cst_40 [0] : vector<16x128xf32> to vector<128xf32>
    %84 = vector.shape_cast %83 : vector<128xf32> to vector<1x128xf32>
    %cst_41 = arith.constant 1.600000e+01 : f32
    %85 = vector.broadcast %cst_41 : f32 to vector<1x128xf32>
    %86 = arith.divf %84, %85 : vector<1x128xf32>
    %87 = vector.broadcast %79 : vector<1x128xf32> to vector<16x128xf32>
    %88 = arith.subf %75, %87 : vector<16x128xf32>
    %cst_42 = arith.constant 9.99999974E-6 : f32
    %89 = vector.broadcast %cst_42 : f32 to vector<1x128xf32>
    %90 = arith.addf %86, %89 : vector<1x128xf32>
    %91 = math.rsqrt %90 : vector<1x128xf32>
    %92 = vector.broadcast %91 : vector<1x128xf32> to vector<16x128xf32>
    %93 = arith.mulf %88, %92 : vector<16x128xf32>
    %c2 = arith.constant 2 : index
    %c0_43 = arith.constant 0 : index
    %c0_44 = arith.constant 0 : index
    %94 = vector.load %arg5[%c2, %c0_43, %c0_44] : memref<4x1x128xf32, #tpu.memory_space<vmem>>, vector<1x1x128xf32>
    %95 = vector.shape_cast %94 : vector<1x1x128xf32> to vector<1x128xf32>
    %96 = vector.broadcast %95 : vector<1x128xf32> to vector<16x128xf32>
    %97 = arith.mulf %93, %96 : vector<16x128xf32>
    %c2_45 = arith.constant 2 : index
    %c0_46 = arith.constant 0 : index
    %c0_47 = arith.constant 0 : index
    %98 = vector.load %arg6[%c2_45, %c0_46, %c0_47] : memref<4x1x128xf32, #tpu.memory_space<vmem>>, vector<1x1x128xf32>
    %99 = vector.shape_cast %98 : vector<1x1x128xf32> to vector<1x128xf32>
    %100 = vector.broadcast %99 : vector<1x128xf32> to vector<16x128xf32>
    %101 = arith.addf %97, %100 : vector<16x128xf32>
    %cst_48 = arith.constant 0.000000e+00 : f32
    %102 = vector.broadcast %cst_48 : f32 to vector<16x128xf32>
    %103 = arith.maximumf %101, %102 : vector<16x128xf32>
    %104 = arith.truncf %103 : vector<16x128xf32> to vector<16x128xbf16>
    %c2_49 = arith.constant 2 : index
    %c0_50 = arith.constant 0 : index
    %c0_51 = arith.constant 0 : index
    %105 = vector.load %arg3[%c2_49, %c0_50, %c0_51] : memref<4x128x128xbf16, #tpu.memory_space<vmem>>, vector<1x128x128xbf16>
    %106 = vector.shape_cast %105 : vector<1x128x128xbf16> to vector<128x128xbf16>
    %cst_52 = arith.constant dense<0.000000e+00> : vector<16x128xf32>
    %107 = tpu.matmul %104, %106, %cst_52 {dimension_numbers = #tpu.dot_dimension_numbers<[1], [0], [0], [1], [0, 0, 1, 1], [], []>} : vector<16x128xbf16>, vector<128x128xbf16>, vector<16x128xf32> -> vector<16x128xf32>
    %108 = arith.addf %74, %107 : vector<16x128xf32>
    %109 = vector.extract_strided_slice %5 {offsets = [48, 0], sizes = [16, 128], strides = [1, 1]} : vector<64x128xf32> to vector<16x128xf32>
    %cst_53 = arith.constant dense<0.000000e+00> : vector<128xf32>
    %110 = vector.multi_reduction <add>, %109, %cst_53 [0] : vector<16x128xf32> to vector<128xf32>
    %111 = vector.shape_cast %110 : vector<128xf32> to vector<1x128xf32>
    %cst_54 = arith.constant 1.600000e+01 : f32
    %112 = vector.broadcast %cst_54 : f32 to vector<1x128xf32>
    %113 = arith.divf %111, %112 : vector<1x128xf32>
    %114 = vector.broadcast %113 : vector<1x128xf32> to vector<16x128xf32>
    %115 = arith.subf %109, %114 : vector<16x128xf32>
    %116 = arith.mulf %115, %115 : vector<16x128xf32>
    %cst_55 = arith.constant dense<0.000000e+00> : vector<128xf32>
    %117 = vector.multi_reduction <add>, %116, %cst_55 [0] : vector<16x128xf32> to vector<128xf32>
    %118 = vector.shape_cast %117 : vector<128xf32> to vector<1x128xf32>
    %cst_56 = arith.constant 1.600000e+01 : f32
    %119 = vector.broadcast %cst_56 : f32 to vector<1x128xf32>
    %120 = arith.divf %118, %119 : vector<1x128xf32>
    %121 = vector.broadcast %113 : vector<1x128xf32> to vector<16x128xf32>
    %122 = arith.subf %109, %121 : vector<16x128xf32>
    %cst_57 = arith.constant 9.99999974E-6 : f32
    %123 = vector.broadcast %cst_57 : f32 to vector<1x128xf32>
    %124 = arith.addf %120, %123 : vector<1x128xf32>
    %125 = math.rsqrt %124 : vector<1x128xf32>
    %126 = vector.broadcast %125 : vector<1x128xf32> to vector<16x128xf32>
    %127 = arith.mulf %122, %126 : vector<16x128xf32>
    %c3 = arith.constant 3 : index
    %c0_58 = arith.constant 0 : index
    %c0_59 = arith.constant 0 : index
    %128 = vector.load %arg5[%c3, %c0_58, %c0_59] : memref<4x1x128xf32, #tpu.memory_space<vmem>>, vector<1x1x128xf32>
    %129 = vector.shape_cast %128 : vector<1x1x128xf32> to vector<1x128xf32>
    %130 = vector.broadcast %129 : vector<1x128xf32> to vector<16x128xf32>
    %131 = arith.mulf %127, %130 : vector<16x128xf32>
    %c3_60 = arith.constant 3 : index
    %c0_61 = arith.constant 0 : index
    %c0_62 = arith.constant 0 : index
    %132 = vector.load %arg6[%c3_60, %c0_61, %c0_62] : memref<4x1x128xf32, #tpu.memory_space<vmem>>, vector<1x1x128xf32>
    %133 = vector.shape_cast %132 : vector<1x1x128xf32> to vector<1x128xf32>
    %134 = vector.broadcast %133 : vector<1x128xf32> to vector<16x128xf32>
    %135 = arith.addf %131, %134 : vector<16x128xf32>
    %cst_63 = arith.constant 0.000000e+00 : f32
    %136 = vector.broadcast %cst_63 : f32 to vector<16x128xf32>
    %137 = arith.maximumf %135, %136 : vector<16x128xf32>
    %138 = arith.truncf %137 : vector<16x128xf32> to vector<16x128xbf16>
    %c3_64 = arith.constant 3 : index
    %c0_65 = arith.constant 0 : index
    %c0_66 = arith.constant 0 : index
    %139 = vector.load %arg3[%c3_64, %c0_65, %c0_66] : memref<4x128x128xbf16, #tpu.memory_space<vmem>>, vector<1x128x128xbf16>
    %140 = vector.shape_cast %139 : vector<1x128x128xbf16> to vector<128x128xbf16>
    %cst_67 = arith.constant dense<0.000000e+00> : vector<16x128xf32>
    %141 = tpu.matmul %138, %140, %cst_67 {dimension_numbers = #tpu.dot_dimension_numbers<[1], [0], [0], [1], [0, 0, 1, 1], [], []>} : vector<16x128xbf16>, vector<128x128xbf16>, vector<16x128xf32> -> vector<16x128xf32>
    %142 = arith.addf %108, %141 : vector<16x128xf32>
    %c0_68 = arith.constant 0 : index
    %c0_69 = arith.constant 0 : index
    %143 = vector.load %arg1[%c0_68, %c0_69] : memref<64x16xbf16, #tpu.memory_space<vmem>>, vector<64x16xbf16>
    %144 = arith.truncf %142 : vector<16x128xf32> to vector<16x128xbf16>
    %cst_70 = arith.constant dense<0.000000e+00> : vector<64x128xf32>
    %145 = tpu.matmul %143, %144, %cst_70 {dimension_numbers = #tpu.dot_dimension_numbers<[1], [0], [0], [1], [0, 0, 1, 1], [], []>} : vector<64x16xbf16>, vector<16x128xbf16>, vector<64x128xf32> -> vector<64x128xf32>
    %cst_71 = arith.constant 0.000000e+00 : f32
    %146 = vector.broadcast %cst_71 : f32 to vector<16x128xf32>
    %147 = vector.extract_strided_slice %145 {offsets = [0, 0], sizes = [16, 128], strides = [1, 1]} : vector<64x128xf32> to vector<16x128xf32>
    %cst_72 = arith.constant dense<0.000000e+00> : vector<128xf32>
    %148 = vector.multi_reduction <add>, %147, %cst_72 [0] : vector<16x128xf32> to vector<128xf32>
    %149 = vector.shape_cast %148 : vector<128xf32> to vector<1x128xf32>
    %cst_73 = arith.constant 1.600000e+01 : f32
    %150 = vector.broadcast %cst_73 : f32 to vector<1x128xf32>
    %151 = arith.divf %149, %150 : vector<1x128xf32>
    %152 = vector.broadcast %151 : vector<1x128xf32> to vector<16x128xf32>
    %153 = arith.subf %147, %152 : vector<16x128xf32>
    %154 = arith.mulf %153, %153 : vector<16x128xf32>
    %cst_74 = arith.constant dense<0.000000e+00> : vector<128xf32>
    %155 = vector.multi_reduction <add>, %154, %cst_74 [0] : vector<16x128xf32> to vector<128xf32>
    %156 = vector.shape_cast %155 : vector<128xf32> to vector<1x128xf32>
    %cst_75 = arith.constant 1.600000e+01 : f32
    %157 = vector.broadcast %cst_75 : f32 to vector<1x128xf32>
    %158 = arith.divf %156, %157 : vector<1x128xf32>
    %159 = vector.broadcast %151 : vector<1x128xf32> to vector<16x128xf32>
    %160 = arith.subf %147, %159 : vector<16x128xf32>
    %cst_76 = arith.constant 9.99999974E-6 : f32
    %161 = vector.broadcast %cst_76 : f32 to vector<1x128xf32>
    %162 = arith.addf %158, %161 : vector<1x128xf32>
    %163 = math.rsqrt %162 : vector<1x128xf32>
    %164 = vector.broadcast %163 : vector<1x128xf32> to vector<16x128xf32>
    %165 = arith.mulf %160, %164 : vector<16x128xf32>
    %c0_77 = arith.constant 0 : index
    %c0_78 = arith.constant 0 : index
    %c0_79 = arith.constant 0 : index
    %166 = vector.load %arg7[%c0_77, %c0_78, %c0_79] : memref<4x1x128xf32, #tpu.memory_space<vmem>>, vector<1x1x128xf32>
    %167 = vector.shape_cast %166 : vector<1x1x128xf32> to vector<1x128xf32>
    %168 = vector.broadcast %167 : vector<1x128xf32> to vector<16x128xf32>
    %169 = arith.mulf %165, %168 : vector<16x128xf32>
    %c0_80 = arith.constant 0 : index
    %c0_81 = arith.constant 0 : index
    %c0_82 = arith.constant 0 : index
    %170 = vector.load %arg8[%c0_80, %c0_81, %c0_82] : memref<4x1x128xf32, #tpu.memory_space<vmem>>, vector<1x1x128xf32>
    %171 = vector.shape_cast %170 : vector<1x1x128xf32> to vector<1x128xf32>
    %172 = vector.broadcast %171 : vector<1x128xf32> to vector<16x128xf32>
    %173 = arith.addf %169, %172 : vector<16x128xf32>
    %174 = arith.truncf %173 : vector<16x128xf32> to vector<16x128xbf16>
    %c0_83 = arith.constant 0 : index
    %c0_84 = arith.constant 0 : index
    %c0_85 = arith.constant 0 : index
    %175 = vector.load %arg4[%c0_83, %c0_84, %c0_85] : memref<4x128x128xbf16, #tpu.memory_space<vmem>>, vector<1x128x128xbf16>
    %176 = vector.shape_cast %175 : vector<1x128x128xbf16> to vector<128x128xbf16>
    %cst_86 = arith.constant dense<0.000000e+00> : vector<16x128xf32>
    %177 = tpu.matmul %174, %176, %cst_86 {dimension_numbers = #tpu.dot_dimension_numbers<[1], [0], [0], [1], [0, 0, 1, 1], [], []>} : vector<16x128xbf16>, vector<128x128xbf16>, vector<16x128xf32> -> vector<16x128xf32>
    %178 = arith.addf %146, %177 : vector<16x128xf32>
    %179 = vector.extract_strided_slice %145 {offsets = [16, 0], sizes = [16, 128], strides = [1, 1]} : vector<64x128xf32> to vector<16x128xf32>
    %cst_87 = arith.constant dense<0.000000e+00> : vector<128xf32>
    %180 = vector.multi_reduction <add>, %179, %cst_87 [0] : vector<16x128xf32> to vector<128xf32>
    %181 = vector.shape_cast %180 : vector<128xf32> to vector<1x128xf32>
    %cst_88 = arith.constant 1.600000e+01 : f32
    %182 = vector.broadcast %cst_88 : f32 to vector<1x128xf32>
    %183 = arith.divf %181, %182 : vector<1x128xf32>
    %184 = vector.broadcast %183 : vector<1x128xf32> to vector<16x128xf32>
    %185 = arith.subf %179, %184 : vector<16x128xf32>
    %186 = arith.mulf %185, %185 : vector<16x128xf32>
    %cst_89 = arith.constant dense<0.000000e+00> : vector<128xf32>
    %187 = vector.multi_reduction <add>, %186, %cst_89 [0] : vector<16x128xf32> to vector<128xf32>
    %188 = vector.shape_cast %187 : vector<128xf32> to vector<1x128xf32>
    %cst_90 = arith.constant 1.600000e+01 : f32
    %189 = vector.broadcast %cst_90 : f32 to vector<1x128xf32>
    %190 = arith.divf %188, %189 : vector<1x128xf32>
    %191 = vector.broadcast %183 : vector<1x128xf32> to vector<16x128xf32>
    %192 = arith.subf %179, %191 : vector<16x128xf32>
    %cst_91 = arith.constant 9.99999974E-6 : f32
    %193 = vector.broadcast %cst_91 : f32 to vector<1x128xf32>
    %194 = arith.addf %190, %193 : vector<1x128xf32>
    %195 = math.rsqrt %194 : vector<1x128xf32>
    %196 = vector.broadcast %195 : vector<1x128xf32> to vector<16x128xf32>
    %197 = arith.mulf %192, %196 : vector<16x128xf32>
    %c1_92 = arith.constant 1 : index
    %c0_93 = arith.constant 0 : index
    %c0_94 = arith.constant 0 : index
    %198 = vector.load %arg7[%c1_92, %c0_93, %c0_94] : memref<4x1x128xf32, #tpu.memory_space<vmem>>, vector<1x1x128xf32>
    %199 = vector.shape_cast %198 : vector<1x1x128xf32> to vector<1x128xf32>
    %200 = vector.broadcast %199 : vector<1x128xf32> to vector<16x128xf32>
    %201 = arith.mulf %197, %200 : vector<16x128xf32>
    %c1_95 = arith.constant 1 : index
    %c0_96 = arith.constant 0 : index
    %c0_97 = arith.constant 0 : index
    %202 = vector.load %arg8[%c1_95, %c0_96, %c0_97] : memref<4x1x128xf32, #tpu.memory_space<vmem>>, vector<1x1x128xf32>
    %203 = vector.shape_cast %202 : vector<1x1x128xf32> to vector<1x128xf32>
    %204 = vector.broadcast %203 : vector<1x128xf32> to vector<16x128xf32>
    %205 = arith.addf %201, %204 : vector<16x128xf32>
    %206 = arith.truncf %205 : vector<16x128xf32> to vector<16x128xbf16>
    %c1_98 = arith.constant 1 : index
    %c0_99 = arith.constant 0 : index
    %c0_100 = arith.constant 0 : index
    %207 = vector.load %arg4[%c1_98, %c0_99, %c0_100] : memref<4x128x128xbf16, #tpu.memory_space<vmem>>, vector<1x128x128xbf16>
    %208 = vector.shape_cast %207 : vector<1x128x128xbf16> to vector<128x128xbf16>
    %cst_101 = arith.constant dense<0.000000e+00> : vector<16x128xf32>
    %209 = tpu.matmul %206, %208, %cst_101 {dimension_numbers = #tpu.dot_dimension_numbers<[1], [0], [0], [1], [0, 0, 1, 1], [], []>} : vector<16x128xbf16>, vector<128x128xbf16>, vector<16x128xf32> -> vector<16x128xf32>
    %210 = arith.addf %178, %209 : vector<16x128xf32>
    %211 = vector.extract_strided_slice %145 {offsets = [32, 0], sizes = [16, 128], strides = [1, 1]} : vector<64x128xf32> to vector<16x128xf32>
    %cst_102 = arith.constant dense<0.000000e+00> : vector<128xf32>
    %212 = vector.multi_reduction <add>, %211, %cst_102 [0] : vector<16x128xf32> to vector<128xf32>
    %213 = vector.shape_cast %212 : vector<128xf32> to vector<1x128xf32>
    %cst_103 = arith.constant 1.600000e+01 : f32
    %214 = vector.broadcast %cst_103 : f32 to vector<1x128xf32>
    %215 = arith.divf %213, %214 : vector<1x128xf32>
    %216 = vector.broadcast %215 : vector<1x128xf32> to vector<16x128xf32>
    %217 = arith.subf %211, %216 : vector<16x128xf32>
    %218 = arith.mulf %217, %217 : vector<16x128xf32>
    %cst_104 = arith.constant dense<0.000000e+00> : vector<128xf32>
    %219 = vector.multi_reduction <add>, %218, %cst_104 [0] : vector<16x128xf32> to vector<128xf32>
    %220 = vector.shape_cast %219 : vector<128xf32> to vector<1x128xf32>
    %cst_105 = arith.constant 1.600000e+01 : f32
    %221 = vector.broadcast %cst_105 : f32 to vector<1x128xf32>
    %222 = arith.divf %220, %221 : vector<1x128xf32>
    %223 = vector.broadcast %215 : vector<1x128xf32> to vector<16x128xf32>
    %224 = arith.subf %211, %223 : vector<16x128xf32>
    %cst_106 = arith.constant 9.99999974E-6 : f32
    %225 = vector.broadcast %cst_106 : f32 to vector<1x128xf32>
    %226 = arith.addf %222, %225 : vector<1x128xf32>
    %227 = math.rsqrt %226 : vector<1x128xf32>
    %228 = vector.broadcast %227 : vector<1x128xf32> to vector<16x128xf32>
    %229 = arith.mulf %224, %228 : vector<16x128xf32>
    %c2_107 = arith.constant 2 : index
    %c0_108 = arith.constant 0 : index
    %c0_109 = arith.constant 0 : index
    %230 = vector.load %arg7[%c2_107, %c0_108, %c0_109] : memref<4x1x128xf32, #tpu.memory_space<vmem>>, vector<1x1x128xf32>
    %231 = vector.shape_cast %230 : vector<1x1x128xf32> to vector<1x128xf32>
    %232 = vector.broadcast %231 : vector<1x128xf32> to vector<16x128xf32>
    %233 = arith.mulf %229, %232 : vector<16x128xf32>
    %c2_110 = arith.constant 2 : index
    %c0_111 = arith.constant 0 : index
    %c0_112 = arith.constant 0 : index
    %234 = vector.load %arg8[%c2_110, %c0_111, %c0_112] : memref<4x1x128xf32, #tpu.memory_space<vmem>>, vector<1x1x128xf32>
    %235 = vector.shape_cast %234 : vector<1x1x128xf32> to vector<1x128xf32>
    %236 = vector.broadcast %235 : vector<1x128xf32> to vector<16x128xf32>
    %237 = arith.addf %233, %236 : vector<16x128xf32>
    %238 = arith.truncf %237 : vector<16x128xf32> to vector<16x128xbf16>
    %c2_113 = arith.constant 2 : index
    %c0_114 = arith.constant 0 : index
    %c0_115 = arith.constant 0 : index
    %239 = vector.load %arg4[%c2_113, %c0_114, %c0_115] : memref<4x128x128xbf16, #tpu.memory_space<vmem>>, vector<1x128x128xbf16>
    %240 = vector.shape_cast %239 : vector<1x128x128xbf16> to vector<128x128xbf16>
    %cst_116 = arith.constant dense<0.000000e+00> : vector<16x128xf32>
    %241 = tpu.matmul %238, %240, %cst_116 {dimension_numbers = #tpu.dot_dimension_numbers<[1], [0], [0], [1], [0, 0, 1, 1], [], []>} : vector<16x128xbf16>, vector<128x128xbf16>, vector<16x128xf32> -> vector<16x128xf32>
    %242 = arith.addf %210, %241 : vector<16x128xf32>
    %243 = vector.extract_strided_slice %145 {offsets = [48, 0], sizes = [16, 128], strides = [1, 1]} : vector<64x128xf32> to vector<16x128xf32>
    %cst_117 = arith.constant dense<0.000000e+00> : vector<128xf32>
    %244 = vector.multi_reduction <add>, %243, %cst_117 [0] : vector<16x128xf32> to vector<128xf32>
    %245 = vector.shape_cast %244 : vector<128xf32> to vector<1x128xf32>
    %cst_118 = arith.constant 1.600000e+01 : f32
    %246 = vector.broadcast %cst_118 : f32 to vector<1x128xf32>
    %247 = arith.divf %245, %246 : vector<1x128xf32>
    %248 = vector.broadcast %247 : vector<1x128xf32> to vector<16x128xf32>
    %249 = arith.subf %243, %248 : vector<16x128xf32>
    %250 = arith.mulf %249, %249 : vector<16x128xf32>
    %cst_119 = arith.constant dense<0.000000e+00> : vector<128xf32>
    %251 = vector.multi_reduction <add>, %250, %cst_119 [0] : vector<16x128xf32> to vector<128xf32>
    %252 = vector.shape_cast %251 : vector<128xf32> to vector<1x128xf32>
    %cst_120 = arith.constant 1.600000e+01 : f32
    %253 = vector.broadcast %cst_120 : f32 to vector<1x128xf32>
    %254 = arith.divf %252, %253 : vector<1x128xf32>
    %255 = vector.broadcast %247 : vector<1x128xf32> to vector<16x128xf32>
    %256 = arith.subf %243, %255 : vector<16x128xf32>
    %cst_121 = arith.constant 9.99999974E-6 : f32
    %257 = vector.broadcast %cst_121 : f32 to vector<1x128xf32>
    %258 = arith.addf %254, %257 : vector<1x128xf32>
    %259 = math.rsqrt %258 : vector<1x128xf32>
    %260 = vector.broadcast %259 : vector<1x128xf32> to vector<16x128xf32>
    %261 = arith.mulf %256, %260 : vector<16x128xf32>
    %c3_122 = arith.constant 3 : index
    %c0_123 = arith.constant 0 : index
    %c0_124 = arith.constant 0 : index
    %262 = vector.load %arg7[%c3_122, %c0_123, %c0_124] : memref<4x1x128xf32, #tpu.memory_space<vmem>>, vector<1x1x128xf32>
    %263 = vector.shape_cast %262 : vector<1x1x128xf32> to vector<1x128xf32>
    %264 = vector.broadcast %263 : vector<1x128xf32> to vector<16x128xf32>
    %265 = arith.mulf %261, %264 : vector<16x128xf32>
    %c3_125 = arith.constant 3 : index
    %c0_126 = arith.constant 0 : index
    %c0_127 = arith.constant 0 : index
    %266 = vector.load %arg8[%c3_125, %c0_126, %c0_127] : memref<4x1x128xf32, #tpu.memory_space<vmem>>, vector<1x1x128xf32>
    %267 = vector.shape_cast %266 : vector<1x1x128xf32> to vector<1x128xf32>
    %268 = vector.broadcast %267 : vector<1x128xf32> to vector<16x128xf32>
    %269 = arith.addf %265, %268 : vector<16x128xf32>
    %270 = arith.truncf %269 : vector<16x128xf32> to vector<16x128xbf16>
    %c3_128 = arith.constant 3 : index
    %c0_129 = arith.constant 0 : index
    %c0_130 = arith.constant 0 : index
    %271 = vector.load %arg4[%c3_128, %c0_129, %c0_130] : memref<4x128x128xbf16, #tpu.memory_space<vmem>>, vector<1x128x128xbf16>
    %272 = vector.shape_cast %271 : vector<1x128x128xbf16> to vector<128x128xbf16>
    %cst_131 = arith.constant dense<0.000000e+00> : vector<16x128xf32>
    %273 = tpu.matmul %270, %272, %cst_131 {dimension_numbers = #tpu.dot_dimension_numbers<[1], [0], [0], [1], [0, 0, 1, 1], [], []>} : vector<16x128xbf16>, vector<128x128xbf16>, vector<16x128xf32> -> vector<16x128xf32>
    %274 = arith.addf %242, %273 : vector<16x128xf32>
    %c0_132 = arith.constant 0 : index
    %c0_133 = arith.constant 0 : index
    %275 = vector.load %arg9[%c0_132, %c0_133] : memref<1x128xf32, #tpu.memory_space<vmem>>, vector<1x128xf32>
    %276 = vector.broadcast %275 : vector<1x128xf32> to vector<16x128xf32>
    %277 = arith.addf %274, %276 : vector<16x128xf32>
    %c0_134 = arith.constant 0 : index
    %c0_135 = arith.constant 0 : index
    %278 = vector.load %arg10[%c0_134, %c0_135] : memref<16x128xf32, #tpu.memory_space<vmem>>, vector<16x128xf32>
    tpu.vector_store %arg10[%c0_134, %c0_135], %277 {strides = array<i32>} : memref<16x128xf32, #tpu.memory_space<vmem>>, vector<16x128xf32>,
    return
  }
}

</mosaic_0001>

<llo_original>
// kernel: tpu_custom_call.1
$region0: #{tpu_custom_call.1}
  #allocation0 [shape = 'u32[]', space=smem, size = 0x4, offset = 0x4, fixed_abs, tag = 'smem constant byte address 0x4 - core index']
  #allocation1 [shape = 'u32[144,128]{1,0:T(1,128)}', space=vmem, size = 0x12000, scoped, tag = 'internal scratch']
  %s0 = inlined_call_operand.vmem [shape: bf16[16,128], index: 0, kind: input, shape index: {}]
  %s1 = inlined_call_operand.vmem [shape: bf16[64,16], index: 1, kind: input, shape index: {}]
  %s2 = inlined_call_operand.hbm [shape: bf16[128,128], index: 2, kind: input, shape index: {}]
  %s3 = inlined_call_operand.hbm [shape: bf16[4,128,128], index: 3, kind: input, shape index: {}]
  %s4 = inlined_call_operand.hbm [shape: bf16[4,128,128], index: 4, kind: input, shape index: {}]
  %s5 = inlined_call_operand.vmem [shape: f32[4,1,128], index: 5, kind: input, shape index: {}]
  %s6 = inlined_call_operand.vmem [shape: f32[4,1,128], index: 6, kind: input, shape index: {}]
  %s7 = inlined_call_operand.vmem [shape: f32[4,1,128], index: 7, kind: input, shape index: {}]
  %s8 = inlined_call_operand.vmem [shape: f32[4,1,128], index: 8, kind: input, shape index: {}]
  %s9 = inlined_call_operand.vmem [shape: f32[1,128], index: 9, kind: input, shape index: {}]
  %s10 = inlined_call_operand.hbm [shape: f32[16,128], index: 10, kind: output, shape index: {}]
  %s11 = sld [smem:[#allocation0]]
  $region62: #{tpu_custom_call.1} parent=0
    _
  %s13 = ssub.s32 1, %s11
  %s14 = scalar_select 0, %s13, %s11
  $region1: #{tpu_custom_call.1} parent=0
    #allocation2 [shape = 'u8[32768]{0}', space=vmem, size = 0x8000, scoped, tag = 'input window, operand 2, single buffered']
    #allocation3 [shape = 's32[1]{0}', space=sflag, size = 0x4, scoped, tag = 'scoped memory for tpu_custom_call.1']
    #allocation4 [shape = 's32[1]{0}', space=sflag, size = 0x4, scoped, tag = 'scoped memory for tpu_custom_call.1']
    #allocation5 [shape = 'u8[131072]{0}', space=vmem, size = 0x20000, scoped, tag = 'input window, operand 3, single buffered']
    #allocation6 [shape = 's32[1]{0}', space=sflag, size = 0x4, scoped, tag = 'scoped memory for tpu_custom_call.1']
    #allocation7 [shape = 'u8[131072]{0}', space=vmem, size = 0x20000, scoped, tag = 'input window, operand 4, single buffered']
    #allocation8 [shape = 'u8[8192]{0}', space=vmem, size = 0x2000, scoped, tag = 'output window, operand 0, single buffered']
    %15 = vsyncpa [#allocation3], 0
    %16 = vsyncpa [#allocation6], 0
    %17 = vsyncpa [#allocation4], 0
    // Predicated region
    $region2: #{tpu_custom_call.1} parent=1 // pred_check
      _
    $region3: #{tpu_custom_call.1} parent=1 // pred_check_branch
      %19 = sbr.rel (0) target = $region5
    $region4: #{tpu_custom_call.1} parent=1 // pred_region
      _
    $region5: #{tpu_custom_call.1} parent=1 // pred_fallthru
      _
    // Predicated region
    $region6: #{tpu_custom_call.1} parent=1 // pred_check
      _
    $region7: #{tpu_custom_call.1} parent=1 // pred_check_branch
      %21 = sbr.rel (0) target = $region9
    $region8: #{tpu_custom_call.1} parent=1 // pred_region
      _
    $region9: #{tpu_custom_call.1} parent=1 // pred_fallthru
      _
    // Predicated region
    $region10: #{tpu_custom_call.1} parent=1 // pred_check
      _
    $region11: #{tpu_custom_call.1} parent=1 // pred_check_branch
      %23 = sbr.rel (0) target = $region13
    $region12: #{tpu_custom_call.1} parent=1 // pred_region
      %s25 = ssub.s32 1024, 1024
      %26 = vsyncadd [#allocation3], %s25
      %s27 = sshll.u32 [#allocation2], 4
      %s28 = int_to_ptr.vmem [resolvable:$true] %s27
      %33 = dma.hbm_to_vmem [thread:$0]  %s2, 1024, %s28, [#allocation3], 64, 64, 4
    $region13: #{tpu_custom_call.1} parent=1 // pred_fallthru
      _
    // Predicated region
    $region14: #{tpu_custom_call.1} parent=1 // pred_check
      _
    $region15: #{tpu_custom_call.1} parent=1 // pred_check_branch
      %35 = sbr.rel (0) target = $region17
    $region16: #{tpu_custom_call.1} parent=1 // pred_region
      %s37 = ssub.s32 4096, 4096
      %38 = vsyncadd [#allocation6], %s37
      %s39 = sshll.u32 [#allocation5], 4
      %s40 = int_to_ptr.vmem [resolvable:$true] %s39
      %45 = dma.hbm_to_vmem [thread:$0]  %s3, 4096, %s40, [#allocation6], 64, 64, 4
    $region17: #{tpu_custom_call.1} parent=1 // pred_fallthru
      _
    // Predicated region
    $region18: #{tpu_custom_call.1} parent=1 // pred_check
      _
    $region19: #{tpu_custom_call.1} parent=1 // pred_check_branch
      %47 = sbr.rel (0) target = $region21
    $region20: #{tpu_custom_call.1} parent=1 // pred_region
      %s49 = ssub.s32 4096, 4096
      %50 = vsyncadd [#allocation6], %s49
      %s51 = sshll.u32 [#allocation7], 4
      %s52 = int_to_ptr.vmem [resolvable:$true] %s51
      %57 = dma.hbm_to_vmem [thread:$0]  %s4, 4096, %s52, [#allocation6], 64, 64, 4
    $region21: #{tpu_custom_call.1} parent=1 // pred_fallthru
      _
    // Predicated region
    $region22: #{tpu_custom_call.1} parent=1 // pred_check
      _
    $region23: #{tpu_custom_call.1} parent=1 // pred_check_branch
      %59 = sbr.rel (0) target = $region25
    $region24: #{tpu_custom_call.1} parent=1 // pred_region
      _
    $region25: #{tpu_custom_call.1} parent=1 // pred_fallthru
      _
    // Predicated region
    $region26: #{tpu_custom_call.1} parent=1 // pred_check
      _
    $region27: #{tpu_custom_call.1} parent=1 // pred_check_branch
      %61 = sbr.rel (0) target = $region29
    $region28: #{tpu_custom_call.1} parent=1 // pred_region
      _
    $region29: #{tpu_custom_call.1} parent=1 // pred_fallthru
      _
    // Predicated region
    $region30: #{tpu_custom_call.1} parent=1 // pred_check
      _
    $region31: #{tpu_custom_call.1} parent=1 // pred_check_branch
      %63 = sbr.rel (0) target = $region33
    $region32: #{tpu_custom_call.1} parent=1 // pred_region
      _
    $region33: #{tpu_custom_call.1} parent=1 // pred_fallthru
      _
    // Predicated region
    $region34: #{tpu_custom_call.1} parent=1 // pred_check
      _
    $region35: #{tpu_custom_call.1} parent=1 // pred_check_branch
      %65 = sbr.rel (0) target = $region37
    $region36: #{tpu_custom_call.1} parent=1 // pred_region
      _
    $region37: #{tpu_custom_call.1} parent=1 // pred_fallthru
      _
    // Predicated region
    $region38: #{tpu_custom_call.1} parent=1 // pred_check
      _
    $region39: #{tpu_custom_call.1} parent=1 // pred_check_branch
      %67 = sbr.rel (0) target = $region41
    $region40: #{tpu_custom_call.1} parent=1 // pred_region
      _
    $region41: #{tpu_custom_call.1} parent=1 // pred_fallthru
      _
    // Predicated region
    $region42: #{tpu_custom_call.1} parent=1 // pred_check
      _
    $region43: #{tpu_custom_call.1} parent=1 // pred_check_branch
      %69 = sbr.rel (0) target = $region45
    $region44: #{tpu_custom_call.1} parent=1 // pred_region
      %70 = dma.done [#allocation3], 1024
    $region45: #{tpu_custom_call.1} parent=1 // pred_fallthru
      _
    // Predicated region
    $region46: #{tpu_custom_call.1} parent=1 // pred_check
      _
    $region47: #{tpu_custom_call.1} parent=1 // pred_check_branch
      %72 = sbr.rel (0) target = $region49
    $region48: #{tpu_custom_call.1} parent=1 // pred_region
      %73 = dma.done [#allocation6], 4096
    $region49: #{tpu_custom_call.1} parent=1 // pred_fallthru
      _
    // Predicated region
    $region50: #{tpu_custom_call.1} parent=1 // pred_check
      _
    $region51: #{tpu_custom_call.1} parent=1 // pred_check_branch
      %75 = sbr.rel (0) target = $region53
    $region52: #{tpu_custom_call.1} parent=1 // pred_region
      %76 = dma.done [#allocation6], 4096
    $region53: #{tpu_custom_call.1} parent=1 // pred_fallthru
      _
    %v78 = vld [vmem:[%s0] sm:$0xf]
    %v79 = vld [vmem:[%s0 + $0x4] sm:$0xf]
    %v80 = vld [vmem:[#allocation2] sm:$0xf]
    %v81 = vld [vmem:[#allocation2 + $0x4] sm:$0xf]
    %v82 = vld [vmem:[#allocation2 + $0x8] sm:$0xf]
    %v83 = vld [vmem:[#allocation2 + $0xc] sm:$0xf]
    %v84 = vld [vmem:[#allocation2 + $0x10] sm:$0xf]
    %v85 = vld [vmem:[#allocation2 + $0x14] sm:$0xf]
    %v86 = vld [vmem:[#allocation2 + $0x18] sm:$0xf]
    %v87 = vld [vmem:[#allocation2 + $0x1c] sm:$0xf]
    %v88 = vld [vmem:[#allocation2 + $0x20] sm:$0xf]
    %v89 = vld [vmem:[#allocation2 + $0x24] sm:$0xf]
    %v90 = vld [vmem:[#allocation2 + $0x28] sm:$0xf]
    %v91 = vld [vmem:[#allocation2 + $0x2c] sm:$0xf]
    %v92 = vld [vmem:[#allocation2 + $0x30] sm:$0xf]
    %v93 = vld [vmem:[#allocation2 + $0x34] sm:$0xf]
    %v94 = vld [vmem:[#allocation2 + $0x38] sm:$0xf]
    %v95 = vld [vmem:[#allocation2 + $0x3c] sm:$0xf]
    %v98 = vunpack.c.l.b16 %v78
    %v99 = vunpack.c.l.b16 %v79
    %v100 = vpack.c.b16 %v99, %v98
    %v118 = vunpack.c.l.b16 %v80
    %v119 = vunpack.c.l.b16 %v81
    %v120 = vunpack.c.l.b16 %v82
    %v121 = vunpack.c.l.b16 %v83
    %v122 = vunpack.c.l.b16 %v84
    %v123 = vunpack.c.l.b16 %v85
    %v124 = vunpack.c.l.b16 %v86
    %v125 = vunpack.c.l.b16 %v87
    %v126 = vunpack.c.l.b16 %v88
    %v127 = vunpack.c.l.b16 %v89
    %v128 = vunpack.c.l.b16 %v90
    %v129 = vunpack.c.l.b16 %v91
    %v130 = vunpack.c.l.b16 %v92
    %v131 = vunpack.c.l.b16 %v93
    %v132 = vunpack.c.l.b16 %v94
    %v133 = vunpack.c.l.b16 %v95
    %v134 = vpack.c.b16 %v119, %v118
    %v135 = vpack.c.b16 %v121, %v120
    %v136 = vpack.c.b16 %v123, %v122
    %v137 = vpack.c.b16 %v125, %v124
    %v138 = vpack.c.b16 %v127, %v126
    %v139 = vpack.c.b16 %v129, %v128
    %v140 = vpack.c.b16 %v131, %v130
    %v141 = vpack.c.b16 %v133, %v132
    %150 = vmatprep.subr.bf16.mxu0 0
    %151 = vmatpush1.bf16.msra.mxu0 %v141
    %152 = vmatprep.subr.bf16.mxu0 0
    %153 = vmatpush1.bf16.msra.mxu0 %v140
    %154 = vmatprep.subr.bf16.mxu0 0
    %155 = vmatpush1.bf16.msra.mxu0 %v139
    %156 = vmatprep.subr.bf16.mxu0 0
    %157 = vmatpush1.bf16.msra.mxu0 %v138
    %158 = vmatprep.subr.bf16.mxu0 0
    %159 = vmatpush1.bf16.msra.mxu0 %v137
    %160 = vmatprep.subr.bf16.mxu0 0
    %161 = vmatpush1.bf16.msra.mxu0 %v136
    %162 = vmatprep.subr.bf16.mxu0 0
    %163 = vmatpush1.bf16.msra.mxu0 %v135
    %164 = vmatprep.subr.bf16.mxu0 0
    %165 = vmatpush1.bf16.msra.mxu0 %v134
    %166 = vmatprep.subr.bf16.mxu0 0
    %167 = vmatpush2.bf16.msra.mxu0 0
    %168 = vmatprep.subr.bf16.mxu0 0
    %169 = vmatpush2.bf16.msra.mxu0 0
    %170 = vmatprep.subr.bf16.mxu0 0
    %171 = vmatpush2.bf16.msra.mxu0 0
    %172 = vmatprep.subr.bf16.mxu0 0
    %173 = vmatpush2.bf16.msra.mxu0 0
    %174 = vmatprep.subr.bf16.mxu0 0
    %175 = vmatpush2.bf16.msra.mxu0 0
    %176 = vmatprep.subr.bf16.mxu0 0
    %177 = vmatpush2.bf16.msra.mxu0 0
    %178 = vmatprep.subr.bf16.mxu0 0
    %179 = vmatpush2.bf16.msra.mxu0 0
    %180 = vmatprep.subr.bf16.mxu0 0
    %181 = vmatpush2.bf16.msra.mxu0 0
    %182 = vmatprep.mubr.bf16.mxu0 0
    %183 = vmatmul.mubr.bf16.gmra.mxu0 %v100
    %v184 = vpop.f32.mrf.mxu0
    %v185 = vadd.f32 0.0, %v184
    %v186 = vpop.f32.mrf.mxu0
    %v187 = vpop.f32.mrf.mxu0
    %v188 = vadd.f32 0.0, %v187
    %v189 = vpop.f32.mrf.mxu0
    %190 = vdwg.mxu0
    %v191 = vld [vmem:[%s1] sm:$0xf]
    %v192 = vld [vmem:[%s1 + $0x4] sm:$0xf]
    %v193 = vld [vmem:[%s1 + $0x8] sm:$0xf]
    %v194 = vld [vmem:[%s1 + $0xc] sm:$0xf]
    %v195 = vld [vmem:[%s1 + $0x10] sm:$0xf]
    %v196 = vld [vmem:[%s1 + $0x14] sm:$0xf]
    %v197 = vld [vmem:[%s1 + $0x18] sm:$0xf]
    %v198 = vld [vmem:[%s1 + $0x1c] sm:$0xf]
    %v199 = vpack.c.bf16 %v188, %v185
    %v208 = vunpack.c.l.b16 %v191
    %v209 = vunpack.c.l.b16 %v192
    %v210 = vunpack.c.l.b16 %v193
    %v211 = vunpack.c.l.b16 %v194
    %v212 = vunpack.c.l.b16 %v195
    %v213 = vunpack.c.l.b16 %v196
    %v214 = vunpack.c.l.b16 %v197
    %v215 = vunpack.c.l.b16 %v198
    %v216 = vpack.c.b16 %v209, %v208
    %v217 = vpack.c.b16 %v211, %v210
    %v218 = vpack.c.b16 %v213, %v212
    %v219 = vpack.c.b16 %v215, %v214
    %vm220 = vcmask 130048
    %v222 = vsel %vm220, %v216, 0
    %v225 = vsel %vm220, %v217, 0
    %v228 = vsel %vm220, %v218, 0
    %v231 = vsel %vm220, %v219, 0
    %233 = vmatprep.subr.bf16.mxu0 0
    %234 = vmatpush1.bf16.msra.mxu0 0
    %235 = vmatprep.subr.bf16.mxu0 0
    %236 = vmatpush1.bf16.msra.mxu0 0
    %237 = vmatprep.subr.bf16.mxu0 0
    %238 = vmatpush1.bf16.msra.mxu0 0
    %239 = vmatprep.subr.bf16.mxu0 0
    %240 = vmatpush1.bf16.msra.mxu0 0
    %241 = vmatprep.subr.bf16.mxu0 0
    %242 = vmatpush1.bf16.msra.mxu0 0
    %243 = vmatprep.subr.bf16.mxu0 0
    %244 = vmatpush1.bf16.msra.mxu0 0
    %245 = vmatprep.subr.bf16.mxu0 0
    %246 = vmatpush1.bf16.msra.mxu0 0
    %247 = vmatprep.subr.bf16.mxu0 0
    %248 = vmatpush1.bf16.msra.mxu0 %v199
    %249 = vmatprep.subr.bf16.mxu0 0
    %250 = vmatpush2.bf16.msra.mxu0 0
    %251 = vmatprep.subr.bf16.mxu0 0
    %252 = vmatpush2.bf16.msra.mxu0 0
    %253 = vmatprep.subr.bf16.mxu0 0
    %254 = vmatpush2.bf16.msra.mxu0 0
    %255 = vmatprep.subr.bf16.mxu0 0
    %256 = vmatpush2.bf16.msra.mxu0 0
    %257 = vmatprep.subr.bf16.mxu0 0
    %258 = vmatpush2.bf16.msra.mxu0 0
    %259 = vmatprep.subr.bf16.mxu0 0
    %260 = vmatpush2.bf16.msra.mxu0 0
    %261 = vmatprep.subr.bf16.mxu0 0
    %262 = vmatpush2.bf16.msra.mxu0 0
    %263 = vmatprep.subr.bf16.mxu0 0
    %264 = vmatpush2.bf16.msra.mxu0 0
    %265 = vmatprep.mubr.bf16.mxu0 0
    %266 = vmatmul.mubr.bf16.gmra.mxu0 %v222
    %v267 = vpop.f32.mrf.mxu0
    %v268 = vadd.f32 0.0, %v267
    %v269 = vpop.f32.mrf.mxu0
    %v270 = vpop.f32.mrf.mxu0
    %v271 = vadd.f32 0.0, %v270
    %v272 = vpop.f32.mrf.mxu0
    %273 = vmatprep.mubr.bf16.mxu0 0
    %274 = vmatmul.mubr.bf16.gmra.mxu0 %v225
    %v275 = vpop.f32.mrf.mxu0
    %v276 = vadd.f32 0.0, %v275
    %v277 = vpop.f32.mrf.mxu0
    %v278 = vpop.f32.mrf.mxu0
    %v279 = vadd.f32 0.0, %v278
    %v280 = vpop.f32.mrf.mxu0
    %281 = vmatprep.mubr.bf16.mxu0 0
    %282 = vmatmul.mubr.bf16.gmra.mxu0 %v228
    %v283 = vpop.f32.mrf.mxu0
    %v284 = vadd.f32 0.0, %v283
    %v285 = vpop.f32.mrf.mxu0
    %v286 = vpop.f32.mrf.mxu0
    %v287 = vadd.f32 0.0, %v286
    %v288 = vpop.f32.mrf.mxu0
    %289 = vmatprep.mubr.bf16.mxu0 0
    %290 = vmatmul.mubr.bf16.gmra.mxu0 %v231
    %v291 = vpop.f32.mrf.mxu0
    %v292 = vadd.f32 0.0, %v291
    %v293 = vpop.f32.mrf.mxu0
    %v294 = vpop.f32.mrf.mxu0
    %v295 = vadd.f32 0.0, %v294
    %v296 = vpop.f32.mrf.mxu0
    %297 = vdwg.mxu0
    %v298 = vadd.f32 %v268, %v271
    %v299 = vrot.slane %v298, 4
    %v300 = vadd.f32 %v298, %v299
    %v301 = vrot.slane %v300, 2
    %v302 = vadd.f32 %v300, %v301
    %v303 = vrot.slane %v302, 1
    %v304 = vadd.f32 %v302, %v303
    %v305 = vrcp.pop 16.0
    %v306 = vmul.f32 %v304, %v305
    %v307 = vsub.f32 %v268, %v306
    %v308 = vsub.f32 %v271, %v306
    %v309 = vmul.f32 %v307, %v307
    %v310 = vmul.f32 %v308, %v308
    %v311 = vadd.f32 %v309, %v310
    %v312 = vrot.slane %v311, 4
    %v313 = vadd.f32 %v311, %v312
    %v314 = vrot.slane %v313, 2
    %v315 = vadd.f32 %v313, %v314
    %v316 = vrot.slane %v315, 1
    %v317 = vadd.f32 %v315, %v316
    %v318 = vmul.f32 %v317, %v305
    %v319 = vadd.f32 %v318, 1e-05
    %v320 = vrsqrt.pop %v319
    %v321 = vmul.f32 %v307, %v320
    %v322 = vmul.f32 %v308, %v320
    %v323 = vld [vmem:[%s5] sm:$0x1]
    %v325 = vlaneseq
    %v326 = vshrl.u32 %v325, 7
    %v327 = vsub.s32 0, %v326
    %v328 = vrot.slane %v323, %v327
    %v330 = vmul.f32 %v321, %v328
    %v331 = vmul.f32 %v322, %v328
    %v332 = vld [vmem:[%s6] sm:$0x1]
    %v334 = vlaneseq
    %v335 = vshrl.u32 %v334, 7
    %v336 = vsub.s32 0, %v335
    %v337 = vrot.slane %v332, %v336
    %v339 = vadd.f32 %v330, %v337
    %v340 = vadd.f32 %v331, %v337
    %v341 = vmax.f32 %v339, 0.0
    %v342 = vmax.f32 %v340, 0.0
    %v343 = vpack.c.bf16 %v342, %v341
    %v344 = vld [vmem:[#allocation5] sm:$0xf]
    %v345 = vld [vmem:[#allocation5 + $0x4] sm:$0xf]
    %v346 = vld [vmem:[#allocation5 + $0x8] sm:$0xf]
    %v347 = vld [vmem:[#allocation5 + $0xc] sm:$0xf]
    %v348 = vld [vmem:[#allocation5 + $0x10] sm:$0xf]
    %v349 = vld [vmem:[#allocation5 + $0x14] sm:$0xf]
    %v350 = vld [vmem:[#allocation5 + $0x18] sm:$0xf]
    %v351 = vld [vmem:[#allocation5 + $0x1c] sm:$0xf]
    %v352 = vld [vmem:[#allocation5 + $0x20] sm:$0xf]
    %v353 = vld [vmem:[#allocation5 + $0x24] sm:$0xf]
    %v354 = vld [vmem:[#allocation5 + $0x28] sm:$0xf]
    %v355 = vld [vmem:[#allocation5 + $0x2c] sm:$0xf]
    %v356 = vld [vmem:[#allocation5 + $0x30] sm:$0xf]
    %v357 = vld [vmem:[#allocation5 + $0x34] sm:$0xf]
    %v358 = vld [vmem:[#allocation5 + $0x38] sm:$0xf]
    %v359 = vld [vmem:[#allocation5 + $0x3c] sm:$0xf]
    %v360 = vadd.f32 %v276, %v279
    %v361 = vrot.slane %v360, 4
    %v362 = vadd.f32 %v360, %v361
    %v363 = vrot.slane %v362, 2
    %v364 = vadd.f32 %v362, %v363
    %v365 = vrot.slane %v364, 1
    %v366 = vadd.f32 %v364, %v365
    %v367 = vmul.f32 %v366, %v305
    %v368 = vsub.f32 %v276, %v367
    %v369 = vsub.f32 %v279, %v367
    %v370 = vmul.f32 %v368, %v368
    %v371 = vmul.f32 %v369, %v369
    %v372 = vadd.f32 %v370, %v371
    %v373 = vrot.slane %v372, 4
    %v374 = vadd.f32 %v372, %v373
    %v375 = vrot.slane %v374, 2
    %v376 = vadd.f32 %v374, %v375
    %v377 = vrot.slane %v376, 1
    %v378 = vadd.f32 %v376, %v377
    %v379 = vmul.f32 %v378, %v305
    %v380 = vadd.f32 %v379, 1e-05
    %v381 = vrsqrt.pop %v380
    %v382 = vmul.f32 %v368, %v381
    %v383 = vmul.f32 %v369, %v381
    %s384 = scalar_lea.vmem %s5, 1
    %v385 = vld [vmem:[%s384] sm:$0x1]
    %v387 = vlaneseq
    %v388 = vshrl.u32 %v387, 7
    %v389 = vsub.s32 0, %v388
    %v390 = vrot.slane %v385, %v389
    %v392 = vmul.f32 %v382, %v390
    %v393 = vmul.f32 %v383, %v390
    %s394 = scalar_lea.vmem %s6, 1
    %v395 = vld [vmem:[%s394] sm:$0x1]
    %v397 = vlaneseq
    %v398 = vshrl.u32 %v397, 7
    %v399 = vsub.s32 0, %v398
    %v400 = vrot.slane %v395, %v399
    %v402 = vadd.f32 %v392, %v400
    %v403 = vadd.f32 %v393, %v400
    %v404 = vmax.f32 %v402, 0.0
    %v405 = vmax.f32 %v403, 0.0
    %v406 = vpack.c.bf16 %v405, %v404
    %s407 = scalar_lea.vmem [#allocation5], 64
    %v408 = vld [vmem:[%s407] sm:$0xf]
    %v409 = vld [vmem:[%s407 + $0x4] sm:$0xf]
    %v410 = vld [vmem:[%s407 + $0x8] sm:$0xf]
    %v411 = vld [vmem:[%s407 + $0xc] sm:$0xf]
    %v412 = vld [vmem:[%s407 + $0x10] sm:$0xf]
    %v413 = vld [vmem:[%s407 + $0x14] sm:$0xf]
    %v414 = vld [vmem:[%s407 + $0x18] sm:$0xf]
    %v415 = vld [vmem:[%s407 + $0x1c] sm:$0xf]
    %v416 = vld [vmem:[%s407 + $0x20] sm:$0xf]
    %v417 = vld [vmem:[%s407 + $0x24] sm:$0xf]
    %v418 = vld [vmem:[%s407 + $0x28] sm:$0xf]
    %v419 = vld [vmem:[%s407 + $0x2c] sm:$0xf]
    %v420 = vld [vmem:[%s407 + $0x30] sm:$0xf]
    %v421 = vld [vmem:[%s407 + $0x34] sm:$0xf]
    %v422 = vld [vmem:[%s407 + $0x38] sm:$0xf]
    %v423 = vld [vmem:[%s407 + $0x3c] sm:$0xf]
    %v440 = vunpack.c.l.b16 %v408
    %v441 = vunpack.c.l.b16 %v409
    %v442 = vunpack.c.l.b16 %v410
    %v443 = vunpack.c.l.b16 %v411
    %v444 = vunpack.c.l.b16 %v412
    %v445 = vunpack.c.l.b16 %v413
    %v446 = vunpack.c.l.b16 %v414
    %v447 = vunpack.c.l.b16 %v415
    %v448 = vunpack.c.l.b16 %v416
    %v449 = vunpack.c.l.b16 %v417
    %v450 = vunpack.c.l.b16 %v418
    %v451 = vunpack.c.l.b16 %v419
    %v452 = vunpack.c.l.b16 %v420
    %v453 = vunpack.c.l.b16 %v421
    %v454 = vunpack.c.l.b16 %v422
    %v455 = vunpack.c.l.b16 %v423
    %v456 = vpack.c.b16 %v441, %v440
    %v457 = vpack.c.b16 %v443, %v442
    %v458 = vpack.c.b16 %v445, %v444
    %v459 = vpack.c.b16 %v447, %v446
    %v460 = vpack.c.b16 %v449, %v448
    %v461 = vpack.c.b16 %v451, %v450
    %v462 = vpack.c.b16 %v453, %v452
    %v463 = vpack.c.b16 %v455, %v454
    %472 = vmatprep.subr.bf16.mxu0 0
    %473 = vmatpush1.bf16.msra.mxu0 %v463
    %474 = vmatprep.subr.bf16.mxu0 0
    %475 = vmatpush1.bf16.msra.mxu0 %v462
    %476 = vmatprep.subr.bf16.mxu0 0
    %477 = vmatpush1.bf16.msra.mxu0 %v461
    %478 = vmatprep.subr.bf16.mxu0 0
    %479 = vmatpush1.bf16.msra.mxu0 %v460
    %480 = vmatprep.subr.bf16.mxu0 0
    %481 = vmatpush1.bf16.msra.mxu0 %v459
    %482 = vmatprep.subr.bf16.mxu0 0
    %483 = vmatpush1.bf16.msra.mxu0 %v458
    %484 = vmatprep.subr.bf16.mxu0 0
    %485 = vmatpush1.bf16.msra.mxu0 %v457
    %486 = vmatprep.subr.bf16.mxu0 0
    %487 = vmatpush1.bf16.msra.mxu0 %v456
    %488 = vmatprep.subr.bf16.mxu0 0
    %489 = vmatpush2.bf16.msra.mxu0 0
    %490 = vmatprep.subr.bf16.mxu0 0
    %491 = vmatpush2.bf16.msra.mxu0 0
    %492 = vmatprep.subr.bf16.mxu0 0
    %493 = vmatpush2.bf16.msra.mxu0 0
    %494 = vmatprep.subr.bf16.mxu0 0
    %495 = vmatpush2.bf16.msra.mxu0 0
    %496 = vmatprep.subr.bf16.mxu0 0
    %497 = vmatpush2.bf16.msra.mxu0 0
    %498 = vmatprep.subr.bf16.mxu0 0
    %499 = vmatpush2.bf16.msra.mxu0 0
    %500 = vmatprep.subr.bf16.mxu0 0
    %501 = vmatpush2.bf16.msra.mxu0 0
    %502 = vmatprep.subr.bf16.mxu0 0
    %503 = vmatpush2.bf16.msra.mxu0 0
    %504 = vmatprep.mubr.bf16.mxu0 0
    %505 = vmatmul.mubr.bf16.gmra.mxu0 %v406
    %v506 = vpop.f32.mrf.mxu0
    %v507 = vadd.f32 0.0, %v506
    %v508 = vpop.f32.mrf.mxu0
    %v509 = vpop.f32.mrf.mxu0
    %v510 = vadd.f32 0.0, %v509
    %v511 = vpop.f32.mrf.mxu0
    %512 = vdwg.mxu0
    %v529 = vunpack.c.l.b16 %v344
    %v530 = vunpack.c.l.b16 %v345
    %v531 = vunpack.c.l.b16 %v346
    %v532 = vunpack.c.l.b16 %v347
    %v533 = vunpack.c.l.b16 %v348
    %v534 = vunpack.c.l.b16 %v349
    %v535 = vunpack.c.l.b16 %v350
    %v536 = vunpack.c.l.b16 %v351
    %v537 = vunpack.c.l.b16 %v352
    %v538 = vunpack.c.l.b16 %v353
    %v539 = vunpack.c.l.b16 %v354
    %v540 = vunpack.c.l.b16 %v355
    %v541 = vunpack.c.l.b16 %v356
    %v542 = vunpack.c.l.b16 %v357
    %v543 = vunpack.c.l.b16 %v358
    %v544 = vunpack.c.l.b16 %v359
    %v545 = vpack.c.b16 %v530, %v529
    %v546 = vpack.c.b16 %v532, %v531
    %v547 = vpack.c.b16 %v534, %v533
    %v548 = vpack.c.b16 %v536, %v535
    %v549 = vpack.c.b16 %v538, %v537
    %v550 = vpack.c.b16 %v540, %v539
    %v551 = vpack.c.b16 %v542, %v541
    %v552 = vpack.c.b16 %v544, %v543
    %561 = vmatprep.subr.bf16.mxu0 0
    %562 = vmatpush1.bf16.msra.mxu0 %v552
    %563 = vmatprep.subr.bf16.mxu0 0
    %564 = vmatpush1.bf16.msra.mxu0 %v551
    %565 = vmatprep.subr.bf16.mxu0 0
    %566 = vmatpush1.bf16.msra.mxu0 %v550
    %567 = vmatprep.subr.bf16.mxu0 0
    %568 = vmatpush1.bf16.msra.mxu0 %v549
    %569 = vmatprep.subr.bf16.mxu0 0
    %570 = vmatpush1.bf16.msra.mxu0 %v548
    %571 = vmatprep.subr.bf16.mxu0 0
    %572 = vmatpush1.bf16.msra.mxu0 %v547
    %573 = vmatprep.subr.bf16.mxu0 0
    %574 = vmatpush1.bf16.msra.mxu0 %v546
    %575 = vmatprep.subr.bf16.mxu0 0
    %576 = vmatpush1.bf16.msra.mxu0 %v545
    %577 = vmatprep.subr.bf16.mxu0 0
    %578 = vmatpush2.bf16.msra.mxu0 0
    %579 = vmatprep.subr.bf16.mxu0 0
    %580 = vmatpush2.bf16.msra.mxu0 0
    %581 = vmatprep.subr.bf16.mxu0 0
    %582 = vmatpush2.bf16.msra.mxu0 0
    %583 = vmatprep.subr.bf16.mxu0 0
    %584 = vmatpush2.bf16.msra.mxu0 0
    %585 = vmatprep.subr.bf16.mxu0 0
    %586 = vmatpush2.bf16.msra.mxu0 0
    %587 = vmatprep.subr.bf16.mxu0 0
    %588 = vmatpush2.bf16.msra.mxu0 0
    %589 = vmatprep.subr.bf16.mxu0 0
    %590 = vmatpush2.bf16.msra.mxu0 0
    %591 = vmatprep.subr.bf16.mxu0 0
    %592 = vmatpush2.bf16.msra.mxu0 0
    %593 = vmatprep.mubr.bf16.mxu0 0
    %594 = vmatmul.mubr.bf16.gmra.mxu0 %v343
    %v595 = vpop.f32.mrf.mxu0
    %v596 = vadd.f32 %v507, %v595
    %v597 = vpop.f32.mrf.mxu0
    %v598 = vpop.f32.mrf.mxu0
    %v599 = vadd.f32 %v510, %v598
    %v600 = vpop.f32.mrf.mxu0
    %601 = vdwg.mxu0
    %v602 = vadd.f32 %v284, %v287
    %v603 = vrot.slane %v602, 4
    %v604 = vadd.f32 %v602, %v603
    %v605 = vrot.slane %v604, 2
    %v606 = vadd.f32 %v604, %v605
    %v607 = vrot.slane %v606, 1
    %v608 = vadd.f32 %v606, %v607
    %v609 = vmul.f32 %v608, %v305
    %v610 = vsub.f32 %v284, %v609
    %v611 = vsub.f32 %v287, %v609
    %v612 = vmul.f32 %v610, %v610
    %v613 = vmul.f32 %v611, %v611
    %v614 = vadd.f32 %v612, %v613
    %v615 = vrot.slane %v614, 4
    %v616 = vadd.f32 %v614, %v615
    %v617 = vrot.slane %v616, 2
    %v618 = vadd.f32 %v616, %v617
    %v619 = vrot.slane %v618, 1
    %v620 = vadd.f32 %v618, %v619
    %v621 = vmul.f32 %v620, %v305
    %v622 = vadd.f32 %v621, 1e-05
    %v623 = vrsqrt.pop %v622
    %v624 = vmul.f32 %v610, %v623
    %v625 = vmul.f32 %v611, %v623
    %s626 = scalar_lea.vmem %s5, 2
    %v627 = vld [vmem:[%s626] sm:$0x1]
    %v629 = vlaneseq
    %v630 = vshrl.u32 %v629, 7
    %v631 = vsub.s32 0, %v630
    %v632 = vrot.slane %v627, %v631
    %v634 = vmul.f32 %v624, %v632
    %v635 = vmul.f32 %v625, %v632
    %s636 = scalar_lea.vmem %s6, 2
    %v637 = vld [vmem:[%s636] sm:$0x1]
    %v639 = vlaneseq
    %v640 = vshrl.u32 %v639, 7
    %v641 = vsub.s32 0, %v640
    %v642 = vrot.slane %v637, %v641
    %v644 = vadd.f32 %v634, %v642
    %v645 = vadd.f32 %v635, %v642
    %v646 = vmax.f32 %v644, 0.0
    %v647 = vmax.f32 %v645, 0.0
    %v648 = vpack.c.bf16 %v647, %v646
    %s649 = scalar_lea.vmem [#allocation5], 128
    %v650 = vld [vmem:[%s649] sm:$0xf]
    %v651 = vld [vmem:[%s649 + $0x4] sm:$0xf]
    %v652 = vld [vmem:[%s649 + $0x8] sm:$0xf]
    %v653 = vld [vmem:[%s649 + $0xc] sm:$0xf]
    %v654 = vld [vmem:[%s649 + $0x10] sm:$0xf]
    %v655 = vld [vmem:[%s649 + $0x14] sm:$0xf]
    %v656 = vld [vmem:[%s649 + $0x18] sm:$0xf]
    %v657 = vld [vmem:[%s649 + $0x1c] sm:$0xf]
    %v658 = vld [vmem:[%s649 + $0x20] sm:$0xf]
    %v659 = vld [vmem:[%s649 + $0x24] sm:$0xf]
    %v660 = vld [vmem:[%s649 + $0x28] sm:$0xf]
    %v661 = vld [vmem:[%s649 + $0x2c] sm:$0xf]
    %v662 = vld [vmem:[%s649 + $0x30] sm:$0xf]
    %v663 = vld [vmem:[%s649 + $0x34] sm:$0xf]
    %v664 = vld [vmem:[%s649 + $0x38] sm:$0xf]
    %v665 = vld [vmem:[%s649 + $0x3c] sm:$0xf]
    %v682 = vunpack.c.l.b16 %v650
    %v683 = vunpack.c.l.b16 %v651
    %v684 = vunpack.c.l.b16 %v652
    %v685 = vunpack.c.l.b16 %v653
    %v686 = vunpack.c.l.b16 %v654
    %v687 = vunpack.c.l.b16 %v655
    %v688 = vunpack.c.l.b16 %v656
    %v689 = vunpack.c.l.b16 %v657
    %v690 = vunpack.c.l.b16 %v658
    %v691 = vunpack.c.l.b16 %v659
    %v692 = vunpack.c.l.b16 %v660
    %v693 = vunpack.c.l.b16 %v661
    %v694 = vunpack.c.l.b16 %v662
    %v695 = vunpack.c.l.b16 %v663
    %v696 = vunpack.c.l.b16 %v664
    %v697 = vunpack.c.l.b16 %v665
    %v698 = vpack.c.b16 %v683, %v682
    %v699 = vpack.c.b16 %v685, %v684
    %v700 = vpack.c.b16 %v687, %v686
    %v701 = vpack.c.b16 %v689, %v688
    %v702 = vpack.c.b16 %v691, %v690
    %v703 = vpack.c.b16 %v693, %v692
    %v704 = vpack.c.b16 %v695, %v694
    %v705 = vpack.c.b16 %v697, %v696
    %714 = vmatprep.subr.bf16.mxu0 0
    %715 = vmatpush1.bf16.msra.mxu0 %v705
    %716 = vmatprep.subr.bf16.mxu0 0
    %717 = vmatpush1.bf16.msra.mxu0 %v704
    %718 = vmatprep.subr.bf16.mxu0 0
    %719 = vmatpush1.bf16.msra.mxu0 %v703
    %720 = vmatprep.subr.bf16.mxu0 0
    %721 = vmatpush1.bf16.msra.mxu0 %v702
    %722 = vmatprep.subr.bf16.mxu0 0
    %723 = vmatpush1.bf16.msra.mxu0 %v701
    %724 = vmatprep.subr.bf16.mxu0 0
    %725 = vmatpush1.bf16.msra.mxu0 %v700
    %726 = vmatprep.subr.bf16.mxu0 0
    %727 = vmatpush1.bf16.msra.mxu0 %v699
    %728 = vmatprep.subr.bf16.mxu0 0
    %729 = vmatpush1.bf16.msra.mxu0 %v698
    %730 = vmatprep.subr.bf16.mxu0 0
    %731 = vmatpush2.bf16.msra.mxu0 0
    %732 = vmatprep.subr.bf16.mxu0 0
    %733 = vmatpush2.bf16.msra.mxu0 0
    %734 = vmatprep.subr.bf16.mxu0 0
    %735 = vmatpush2.bf16.msra.mxu0 0
    %736 = vmatprep.subr.bf16.mxu0 0
    %737 = vmatpush2.bf16.msra.mxu0 0
    %738 = vmatprep.subr.bf16.mxu0 0
    %739 = vmatpush2.bf16.msra.mxu0 0
    %740 = vmatprep.subr.bf16.mxu0 0
    %741 = vmatpush2.bf16.msra.mxu0 0
    %742 = vmatprep.subr.bf16.mxu0 0
    %743 = vmatpush2.bf16.msra.mxu0 0
    %744 = vmatprep.subr.bf16.mxu0 0
    %745 = vmatpush2.bf16.msra.mxu0 0
    %746 = vmatprep.mubr.bf16.mxu0 0
    %747 = vmatmul.mubr.bf16.gmra.mxu0 %v648
    %v748 = vpop.f32.mrf.mxu0
    %v749 = vadd.f32 0.0, %v748
    %v750 = vpop.f32.mrf.mxu0
    %v751 = vpop.f32.mrf.mxu0
    %v752 = vadd.f32 0.0, %v751
    %v753 = vpop.f32.mrf.mxu0
    %754 = vdwg.mxu0
    %v755 = vadd.f32 %v596, %v749
    %v756 = vadd.f32 %v599, %v752
    %v757 = vadd.f32 %v292, %v295
    %v758 = vrot.slane %v757, 4
    %v759 = vadd.f32 %v757, %v758
    %v760 = vrot.slane %v759, 2
    %v761 = vadd.f32 %v759, %v760
    %v762 = vrot.slane %v761, 1
    %v763 = vadd.f32 %v761, %v762
    %v764 = vmul.f32 %v763, %v305
    %v765 = vsub.f32 %v292, %v764
    %v766 = vsub.f32 %v295, %v764
    %v767 = vmul.f32 %v765, %v765
    %v768 = vmul.f32 %v766, %v766
    %v769 = vadd.f32 %v767, %v768
    %v770 = vrot.slane %v769, 4
    %v771 = vadd.f32 %v769, %v770
    %v772 = vrot.slane %v771, 2
    %v773 = vadd.f32 %v771, %v772
    %v774 = vrot.slane %v773, 1
    %v775 = vadd.f32 %v773, %v774
    %v776 = vmul.f32 %v775, %v305
    %v777 = vadd.f32 %v776, 1e-05
    %v778 = vrsqrt.pop %v777
    %v779 = vmul.f32 %v765, %v778
    %v780 = vmul.f32 %v766, %v778
    %s781 = scalar_lea.vmem %s5, 3
    %v782 = vld [vmem:[%s781] sm:$0x1]
    %v784 = vlaneseq
    %v785 = vshrl.u32 %v784, 7
    %v786 = vsub.s32 0, %v785
    %v787 = vrot.slane %v782, %v786
    %v789 = vmul.f32 %v779, %v787
    %v790 = vmul.f32 %v780, %v787
    %s791 = scalar_lea.vmem %s6, 3
    %v792 = vld [vmem:[%s791] sm:$0x1]
    %v794 = vlaneseq
    %v795 = vshrl.u32 %v794, 7
    %v796 = vsub.s32 0, %v795
    %v797 = vrot.slane %v792, %v796
    %v799 = vadd.f32 %v789, %v797
    %v800 = vadd.f32 %v790, %v797
    %v801 = vmax.f32 %v799, 0.0
    %v802 = vmax.f32 %v800, 0.0
    %v803 = vpack.c.bf16 %v802, %v801
    %s804 = scalar_lea.vmem [#allocation5], 192
    %v805 = vld [vmem:[%s804] sm:$0xf]
    %v806 = vld [vmem:[%s804 + $0x4] sm:$0xf]
    %v807 = vld [vmem:[%s804 + $0x8] sm:$0xf]
    %v808 = vld [vmem:[%s804 + $0xc] sm:$0xf]
    %v809 = vld [vmem:[%s804 + $0x10] sm:$0xf]
    %v810 = vld [vmem:[%s804 + $0x14] sm:$0xf]
    %v811 = vld [vmem:[%s804 + $0x18] sm:$0xf]
    %v812 = vld [vmem:[%s804 + $0x1c] sm:$0xf]
    %v813 = vld [vmem:[%s804 + $0x20] sm:$0xf]
    %v814 = vld [vmem:[%s804 + $0x24] sm:$0xf]
    %v815 = vld [vmem:[%s804 + $0x28] sm:$0xf]
    %v816 = vld [vmem:[%s804 + $0x2c] sm:$0xf]
    %v817 = vld [vmem:[%s804 + $0x30] sm:$0xf]
    %v818 = vld [vmem:[%s804 + $0x34] sm:$0xf]
    %v819 = vld [vmem:[%s804 + $0x38] sm:$0xf]
    %v820 = vld [vmem:[%s804 + $0x3c] sm:$0xf]
    %v837 = vunpack.c.l.b16 %v805
    %v838 = vunpack.c.l.b16 %v806
    %v839 = vunpack.c.l.b16 %v807
    %v840 = vunpack.c.l.b16 %v808
    %v841 = vunpack.c.l.b16 %v809
    %v842 = vunpack.c.l.b16 %v810
    %v843 = vunpack.c.l.b16 %v811
    %v844 = vunpack.c.l.b16 %v812
    %v845 = vunpack.c.l.b16 %v813
    %v846 = vunpack.c.l.b16 %v814
    %v847 = vunpack.c.l.b16 %v815
    %v848 = vunpack.c.l.b16 %v816
    %v849 = vunpack.c.l.b16 %v817
    %v850 = vunpack.c.l.b16 %v818
    %v851 = vunpack.c.l.b16 %v819
    %v852 = vunpack.c.l.b16 %v820
    %v853 = vpack.c.b16 %v838, %v837
    %v854 = vpack.c.b16 %v840, %v839
    %v855 = vpack.c.b16 %v842, %v841
    %v856 = vpack.c.b16 %v844, %v843
    %v857 = vpack.c.b16 %v846, %v845
    %v858 = vpack.c.b16 %v848, %v847
    %v859 = vpack.c.b16 %v850, %v849
    %v860 = vpack.c.b16 %v852, %v851
    %869 = vmatprep.subr.bf16.mxu0 0
    %870 = vmatpush1.bf16.msra.mxu0 %v860
    %871 = vmatprep.subr.bf16.mxu0 0
    %872 = vmatpush1.bf16.msra.mxu0 %v859
    %873 = vmatprep.subr.bf16.mxu0 0
    %874 = vmatpush1.bf16.msra.mxu0 %v858
    %875 = vmatprep.subr.bf16.mxu0 0
    %876 = vmatpush1.bf16.msra.mxu0 %v857
    %877 = vmatprep.subr.bf16.mxu0 0
    %878 = vmatpush1.bf16.msra.mxu0 %v856
    %879 = vmatprep.subr.bf16.mxu0 0
    %880 = vmatpush1.bf16.msra.mxu0 %v855
    %881 = vmatprep.subr.bf16.mxu0 0
    %882 = vmatpush1.bf16.msra.mxu0 %v854
    %883 = vmatprep.subr.bf16.mxu0 0
    %884 = vmatpush1.bf16.msra.mxu0 %v853
    %885 = vmatprep.subr.bf16.mxu0 0
    %886 = vmatpush2.bf16.msra.mxu0 0
    %887 = vmatprep.subr.bf16.mxu0 0
    %888 = vmatpush2.bf16.msra.mxu0 0
    %889 = vmatprep.subr.bf16.mxu0 0
    %890 = vmatpush2.bf16.msra.mxu0 0
    %891 = vmatprep.subr.bf16.mxu0 0
    %892 = vmatpush2.bf16.msra.mxu0 0
    %893 = vmatprep.subr.bf16.mxu0 0
    %894 = vmatpush2.bf16.msra.mxu0 0
    %895 = vmatprep.subr.bf16.mxu0 0
    %896 = vmatpush2.bf16.msra.mxu0 0
    %897 = vmatprep.subr.bf16.mxu0 0
    %898 = vmatpush2.bf16.msra.mxu0 0
    %899 = vmatprep.subr.bf16.mxu0 0
    %900 = vmatpush2.bf16.msra.mxu0 0
    %901 = vmatprep.mubr.bf16.mxu0 0
    %902 = vmatmul.mubr.bf16.gmra.mxu0 %v803
    %v903 = vpop.f32.mrf.mxu0
    %v904 = vadd.f32 0.0, %v903
    %v905 = vpop.f32.mrf.mxu0
    %v906 = vpop.f32.mrf.mxu0
    %v907 = vadd.f32 0.0, %v906
    %v908 = vpop.f32.mrf.mxu0
    %909 = vdwg.mxu0
    %v910 = vadd.f32 %v755, %v904
    %v911 = vadd.f32 %v756, %v907
    %v912 = vpack.c.bf16 %v911, %v910
    %913 = vmatprep.subr.bf16.mxu0 0
    %914 = vmatpush1.bf16.msra.mxu0 0
    %915 = vmatprep.subr.bf16.mxu0 0
    %916 = vmatpush1.bf16.msra.mxu0 0
    %917 = vmatprep.subr.bf16.mxu0 0
    %918 = vmatpush1.bf16.msra.mxu0 0
    %919 = vmatprep.subr.bf16.mxu0 0
    %920 = vmatpush1.bf16.msra.mxu0 0
    %921 = vmatprep.subr.bf16.mxu0 0
    %922 = vmatpush1.bf16.msra.mxu0 0
    %923 = vmatprep.subr.bf16.mxu0 0
    %924 = vmatpush1.bf16.msra.mxu0 0
    %925 = vmatprep.subr.bf16.mxu0 0
    %926 = vmatpush1.bf16.msra.mxu0 0
    %927 = vmatprep.subr.bf16.mxu0 0
    %928 = vmatpush1.bf16.msra.mxu0 %v912
    %929 = vmatprep.subr.bf16.mxu0 0
    %930 = vmatpush2.bf16.msra.mxu0 0
    %931 = vmatprep.subr.bf16.mxu0 0
    %932 = vmatpush2.bf16.msra.mxu0 0
    %933 = vmatprep.subr.bf16.mxu0 0
    %934 = vmatpush2.bf16.msra.mxu0 0
    %935 = vmatprep.subr.bf16.mxu0 0
    %936 = vmatpush2.bf16.msra.mxu0 0
    %937 = vmatprep.subr.bf16.mxu0 0
    %938 = vmatpush2.bf16.msra.mxu0 0
    %939 = vmatprep.subr.bf16.mxu0 0
    %940 = vmatpush2.bf16.msra.mxu0 0
    %941 = vmatprep.subr.bf16.mxu0 0
    %942 = vmatpush2.bf16.msra.mxu0 0
    %943 = vmatprep.subr.bf16.mxu0 0
    %944 = vmatpush2.bf16.msra.mxu0 0
    %945 = vmatprep.mubr.bf16.mxu0 0
    %946 = vmatmul.mubr.bf16.gmra.mxu0 %v222
    %v947 = vpop.f32.mrf.mxu0
    %v948 = vadd.f32 0.0, %v947
    %v949 = vpop.f32.mrf.mxu0
    %v950 = vpop.f32.mrf.mxu0
    %v951 = vadd.f32 0.0, %v950
    %v952 = vpop.f32.mrf.mxu0
    %953 = vmatprep.mubr.bf16.mxu0 0
    %954 = vmatmul.mubr.bf16.gmra.mxu0 %v225
    %v955 = vpop.f32.mrf.mxu0
    %v956 = vadd.f32 0.0, %v955
    %v957 = vpop.f32.mrf.mxu0
    %v958 = vpop.f32.mrf.mxu0
    %v959 = vadd.f32 0.0, %v958
    %v960 = vpop.f32.mrf.mxu0
    %961 = vmatprep.mubr.bf16.mxu0 0
    %962 = vmatmul.mubr.bf16.gmra.mxu0 %v228
    %v963 = vpop.f32.mrf.mxu0
    %v964 = vadd.f32 0.0, %v963
    %v965 = vpop.f32.mrf.mxu0
    %v966 = vpop.f32.mrf.mxu0
    %v967 = vadd.f32 0.0, %v966
    %v968 = vpop.f32.mrf.mxu0
    %969 = vmatprep.mubr.bf16.mxu0 0
    %970 = vmatmul.mubr.bf16.gmra.mxu0 %v231
    %v971 = vpop.f32.mrf.mxu0
    %v972 = vadd.f32 0.0, %v971
    %v973 = vpop.f32.mrf.mxu0
    %v974 = vpop.f32.mrf.mxu0
    %v975 = vadd.f32 0.0, %v974
    %v976 = vpop.f32.mrf.mxu0
    %977 = vdwg.mxu0
    %v978 = vadd.f32 %v948, %v951
    %v979 = vrot.slane %v978, 4
    %v980 = vadd.f32 %v978, %v979
    %v981 = vrot.slane %v980, 2
    %v982 = vadd.f32 %v980, %v981
    %v983 = vrot.slane %v982, 1
    %v984 = vadd.f32 %v982, %v983
    %v985 = vmul.f32 %v984, %v305
    %v986 = vsub.f32 %v948, %v985
    %v987 = vsub.f32 %v951, %v985
    %v988 = vmul.f32 %v986, %v986
    %v989 = vmul.f32 %v987, %v987
    %v990 = vadd.f32 %v988, %v989
    %v991 = vrot.slane %v990, 4
    %v992 = vadd.f32 %v990, %v991
    %v993 = vrot.slane %v992, 2
    %v994 = vadd.f32 %v992, %v993
    %v995 = vrot.slane %v994, 1
    %v996 = vadd.f32 %v994, %v995
    %v997 = vmul.f32 %v996, %v305
    %v998 = vadd.f32 %v997, 1e-05
    %v999 = vrsqrt.pop %v998
    %v1000 = vmul.f32 %v986, %v999
    %v1001 = vmul.f32 %v987, %v999
    %v1002 = vld [vmem:[%s7] sm:$0x1]
    %v1004 = vlaneseq
    %v1005 = vshrl.u32 %v1004, 7
    %v1006 = vsub.s32 0, %v1005
    %v1007 = vrot.slane %v1002, %v1006
    %v1009 = vmul.f32 %v1000, %v1007
    %v1010 = vmul.f32 %v1001, %v1007
    %v1011 = vld [vmem:[%s8] sm:$0x1]
    %v1013 = vlaneseq
    %v1014 = vshrl.u32 %v1013, 7
    %v1015 = vsub.s32 0, %v1014
    %v1016 = vrot.slane %v1011, %v1015
    %v1018 = vadd.f32 %v1009, %v1016
    %v1019 = vadd.f32 %v1010, %v1016
    %v1020 = vpack.c.bf16 %v1019, %v1018
    %v1021 = vld [vmem:[#allocation7] sm:$0xf]
    %v1022 = vld [vmem:[#allocation7 + $0x4] sm:$0xf]
    %v1023 = vld [vmem:[#allocation7 + $0x8] sm:$0xf]
    %v1024 = vld [vmem:[#allocation7 + $0xc] sm:$0xf]
    %v1025 = vld [vmem:[#allocation7 + $0x10] sm:$0xf]
    %v1026 = vld [vmem:[#allocation7 + $0x14] sm:$0xf]
    %v1027 = vld [vmem:[#allocation7 + $0x18] sm:$0xf]
    %v1028 = vld [vmem:[#allocation7 + $0x1c] sm:$0xf]
    %v1029 = vld [vmem:[#allocation7 + $0x20] sm:$0xf]
    %v1030 = vld [vmem:[#allocation7 + $0x24] sm:$0xf]
    %v1031 = vld [vmem:[#allocation7 + $0x28] sm:$0xf]
    %v1032 = vld [vmem:[#allocation7 + $0x2c] sm:$0xf]
    %v1033 = vld [vmem:[#allocation7 + $0x30] sm:$0xf]
    %v1034 = vld [vmem:[#allocation7 + $0x34] sm:$0xf]
    %v1035 = vld [vmem:[#allocation7 + $0x38] sm:$0xf]
    %v1036 = vld [vmem:[#allocation7 + $0x3c] sm:$0xf]
    %v1037 = vadd.f32 %v956, %v959
    %v1038 = vrot.slane %v1037, 4
    %v1039 = vadd.f32 %v1037, %v1038
    %v1040 = vrot.slane %v1039, 2
    %v1041 = vadd.f32 %v1039, %v1040
    %v1042 = vrot.slane %v1041, 1
    %v1043 = vadd.f32 %v1041, %v1042
    %v1044 = vmul.f32 %v1043, %v305
    %v1045 = vsub.f32 %v956, %v1044
    %v1046 = vsub.f32 %v959, %v1044
    %v1047 = vmul.f32 %v1045, %v1045
    %v1048 = vmul.f32 %v1046, %v1046
    %v1049 = vadd.f32 %v1047, %v1048
    %v1050 = vrot.slane %v1049, 4
    %v1051 = vadd.f32 %v1049, %v1050
    %v1052 = vrot.slane %v1051, 2
    %v1053 = vadd.f32 %v1051, %v1052
    %v1054 = vrot.slane %v1053, 1
    %v1055 = vadd.f32 %v1053, %v1054
    %v1056 = vmul.f32 %v1055, %v305
    %v1057 = vadd.f32 %v1056, 1e-05
    %v1058 = vrsqrt.pop %v1057
    %v1059 = vmul.f32 %v1045, %v1058
    %v1060 = vmul.f32 %v1046, %v1058
    %s1061 = scalar_lea.vmem %s7, 1
    %v1062 = vld [vmem:[%s1061] sm:$0x1]
    %v1064 = vlaneseq
    %v1065 = vshrl.u32 %v1064, 7
    %v1066 = vsub.s32 0, %v1065
    %v1067 = vrot.slane %v1062, %v1066
    %v1069 = vmul.f32 %v1059, %v1067
    %v1070 = vmul.f32 %v1060, %v1067
    %s1071 = scalar_lea.vmem %s8, 1
    %v1072 = vld [vmem:[%s1071] sm:$0x1]
    %v1074 = vlaneseq
    %v1075 = vshrl.u32 %v1074, 7
    %v1076 = vsub.s32 0, %v1075
    %v1077 = vrot.slane %v1072, %v1076
    %v1079 = vadd.f32 %v1069, %v1077
    %v1080 = vadd.f32 %v1070, %v1077
    %v1081 = vpack.c.bf16 %v1080, %v1079
    %s1082 = scalar_lea.vmem [#allocation7], 64
    %v1083 = vld [vmem:[%s1082] sm:$0xf]
    %v1084 = vld [vmem:[%s1082 + $0x4] sm:$0xf]
    %v1085 = vld [vmem:[%s1082 + $0x8] sm:$0xf]
    %v1086 = vld [vmem:[%s1082 + $0xc] sm:$0xf]
    %v1087 = vld [vmem:[%s1082 + $0x10] sm:$0xf]
    %v1088 = vld [vmem:[%s1082 + $0x14] sm:$0xf]
    %v1089 = vld [vmem:[%s1082 + $0x18] sm:$0xf]
    %v1090 = vld [vmem:[%s1082 + $0x1c] sm:$0xf]
    %v1091 = vld [vmem:[%s1082 + $0x20] sm:$0xf]
    %v1092 = vld [vmem:[%s1082 + $0x24] sm:$0xf]
    %v1093 = vld [vmem:[%s1082 + $0x28] sm:$0xf]
    %v1094 = vld [vmem:[%s1082 + $0x2c] sm:$0xf]
    %v1095 = vld [vmem:[%s1082 + $0x30] sm:$0xf]
    %v1096 = vld [vmem:[%s1082 + $0x34] sm:$0xf]
    %v1097 = vld [vmem:[%s1082 + $0x38] sm:$0xf]
    %v1098 = vld [vmem:[%s1082 + $0x3c] sm:$0xf]
    %v1115 = vunpack.c.l.b16 %v1083
    %v1116 = vunpack.c.l.b16 %v1084
    %v1117 = vunpack.c.l.b16 %v1085
    %v1118 = vunpack.c.l.b16 %v1086
    %v1119 = vunpack.c.l.b16 %v1087
    %v1120 = vunpack.c.l.b16 %v1088
    %v1121 = vunpack.c.l.b16 %v1089
    %v1122 = vunpack.c.l.b16 %v1090
    %v1123 = vunpack.c.l.b16 %v1091
    %v1124 = vunpack.c.l.b16 %v1092
    %v1125 = vunpack.c.l.b16 %v1093
    %v1126 = vunpack.c.l.b16 %v1094
    %v1127 = vunpack.c.l.b16 %v1095
    %v1128 = vunpack.c.l.b16 %v1096
    %v1129 = vunpack.c.l.b16 %v1097
    %v1130 = vunpack.c.l.b16 %v1098
    %v1131 = vpack.c.b16 %v1116, %v1115
    %v1132 = vpack.c.b16 %v1118, %v1117
    %v1133 = vpack.c.b16 %v1120, %v1119
    %v1134 = vpack.c.b16 %v1122, %v1121
    %v1135 = vpack.c.b16 %v1124, %v1123
    %v1136 = vpack.c.b16 %v1126, %v1125
    %v1137 = vpack.c.b16 %v1128, %v1127
    %v1138 = vpack.c.b16 %v1130, %v1129
    %1147 = vmatprep.subr.bf16.mxu0 0
    %1148 = vmatpush1.bf16.msra.mxu0 %v1138
    %1149 = vmatprep.subr.bf16.mxu0 0
    %1150 = vmatpush1.bf16.msra.mxu0 %v1137
    %1151 = vmatprep.subr.bf16.mxu0 0
    %1152 = vmatpush1.bf16.msra.mxu0 %v1136
    %1153 = vmatprep.subr.bf16.mxu0 0
    %1154 = vmatpush1.bf16.msra.mxu0 %v1135
    %1155 = vmatprep.subr.bf16.mxu0 0
    %1156 = vmatpush1.bf16.msra.mxu0 %v1134
    %1157 = vmatprep.subr.bf16.mxu0 0
    %1158 = vmatpush1.bf16.msra.mxu0 %v1133
    %1159 = vmatprep.subr.bf16.mxu0 0
    %1160 = vmatpush1.bf16.msra.mxu0 %v1132
    %1161 = vmatprep.subr.bf16.mxu0 0
    %1162 = vmatpush1.bf16.msra.mxu0 %v1131
    %1163 = vmatprep.subr.bf16.mxu0 0
    %1164 = vmatpush2.bf16.msra.mxu0 0
    %1165 = vmatprep.subr.bf16.mxu0 0
    %1166 = vmatpush2.bf16.msra.mxu0 0
    %1167 = vmatprep.subr.bf16.mxu0 0
    %1168 = vmatpush2.bf16.msra.mxu0 0
    %1169 = vmatprep.subr.bf16.mxu0 0
    %1170 = vmatpush2.bf16.msra.mxu0 0
    %1171 = vmatprep.subr.bf16.mxu0 0
    %1172 = vmatpush2.bf16.msra.mxu0 0
    %1173 = vmatprep.subr.bf16.mxu0 0
    %1174 = vmatpush2.bf16.msra.mxu0 0
    %1175 = vmatprep.subr.bf16.mxu0 0
    %1176 = vmatpush2.bf16.msra.mxu0 0
    %1177 = vmatprep.subr.bf16.mxu0 0
    %1178 = vmatpush2.bf16.msra.mxu0 0
    %1179 = vmatprep.mubr.bf16.mxu0 0
    %1180 = vmatmul.mubr.bf16.gmra.mxu0 %v1081
    %v1181 = vpop.f32.mrf.mxu0
    %v1182 = vadd.f32 0.0, %v1181
    %v1183 = vpop.f32.mrf.mxu0
    %v1184 = vpop.f32.mrf.mxu0
    %v1185 = vadd.f32 0.0, %v1184
    %v1186 = vpop.f32.mrf.mxu0
    %1187 = vdwg.mxu0
    %v1204 = vunpack.c.l.b16 %v1021
    %v1205 = vunpack.c.l.b16 %v1022
    %v1206 = vunpack.c.l.b16 %v1023
    %v1207 = vunpack.c.l.b16 %v1024
    %v1208 = vunpack.c.l.b16 %v1025
    %v1209 = vunpack.c.l.b16 %v1026
    %v1210 = vunpack.c.l.b16 %v1027
    %v1211 = vunpack.c.l.b16 %v1028
    %v1212 = vunpack.c.l.b16 %v1029
    %v1213 = vunpack.c.l.b16 %v1030
    %v1214 = vunpack.c.l.b16 %v1031
    %v1215 = vunpack.c.l.b16 %v1032
    %v1216 = vunpack.c.l.b16 %v1033
    %v1217 = vunpack.c.l.b16 %v1034
    %v1218 = vunpack.c.l.b16 %v1035
    %v1219 = vunpack.c.l.b16 %v1036
    %v1220 = vpack.c.b16 %v1205, %v1204
    %v1221 = vpack.c.b16 %v1207, %v1206
    %v1222 = vpack.c.b16 %v1209, %v1208
    %v1223 = vpack.c.b16 %v1211, %v1210
    %v1224 = vpack.c.b16 %v1213, %v1212
    %v1225 = vpack.c.b16 %v1215, %v1214
    %v1226 = vpack.c.b16 %v1217, %v1216
    %v1227 = vpack.c.b16 %v1219, %v1218
    %1236 = vmatprep.subr.bf16.mxu0 0
    %1237 = vmatpush1.bf16.msra.mxu0 %v1227
    %1238 = vmatprep.subr.bf16.mxu0 0
    %1239 = vmatpush1.bf16.msra.mxu0 %v1226
    %1240 = vmatprep.subr.bf16.mxu0 0
    %1241 = vmatpush1.bf16.msra.mxu0 %v1225
    %1242 = vmatprep.subr.bf16.mxu0 0
    %1243 = vmatpush1.bf16.msra.mxu0 %v1224
    %1244 = vmatprep.subr.bf16.mxu0 0
    %1245 = vmatpush1.bf16.msra.mxu0 %v1223
    %1246 = vmatprep.subr.bf16.mxu0 0
    %1247 = vmatpush1.bf16.msra.mxu0 %v1222
    %1248 = vmatprep.subr.bf16.mxu0 0
    %1249 = vmatpush1.bf16.msra.mxu0 %v1221
    %1250 = vmatprep.subr.bf16.mxu0 0
    %1251 = vmatpush1.bf16.msra.mxu0 %v1220
    %1252 = vmatprep.subr.bf16.mxu0 0
    %1253 = vmatpush2.bf16.msra.mxu0 0
    %1254 = vmatprep.subr.bf16.mxu0 0
    %1255 = vmatpush2.bf16.msra.mxu0 0
    %1256 = vmatprep.subr.bf16.mxu0 0
    %1257 = vmatpush2.bf16.msra.mxu0 0
    %1258 = vmatprep.subr.bf16.mxu0 0
    %1259 = vmatpush2.bf16.msra.mxu0 0
    %1260 = vmatprep.subr.bf16.mxu0 0
    %1261 = vmatpush2.bf16.msra.mxu0 0
    %1262 = vmatprep.subr.bf16.mxu0 0
    %1263 = vmatpush2.bf16.msra.mxu0 0
    %1264 = vmatprep.subr.bf16.mxu0 0
    %1265 = vmatpush2.bf16.msra.mxu0 0
    %1266 = vmatprep.subr.bf16.mxu0 0
    %1267 = vmatpush2.bf16.msra.mxu0 0
    %1268 = vmatprep.mubr.bf16.mxu0 0
    %1269 = vmatmul.mubr.bf16.gmra.mxu0 %v1020
    %v1270 = vpop.f32.mrf.mxu0
    %v1271 = vadd.f32 %v1182, %v1270
    %v1272 = vpop.f32.mrf.mxu0
    %v1273 = vpop.f32.mrf.mxu0
    %v1274 = vadd.f32 %v1185, %v1273
    %v1275 = vpop.f32.mrf.mxu0
    %1276 = vdwg.mxu0
    %v1277 = vadd.f32 %v964, %v967
    %v1278 = vrot.slane %v1277, 4
    %v1279 = vadd.f32 %v1277, %v1278
    %v1280 = vrot.slane %v1279, 2
    %v1281 = vadd.f32 %v1279, %v1280
    %v1282 = vrot.slane %v1281, 1
    %v1283 = vadd.f32 %v1281, %v1282
    %v1284 = vmul.f32 %v1283, %v305
    %v1285 = vsub.f32 %v964, %v1284
    %v1286 = vsub.f32 %v967, %v1284
    %v1287 = vmul.f32 %v1285, %v1285
    %v1288 = vmul.f32 %v1286, %v1286
    %v1289 = vadd.f32 %v1287, %v1288
    %v1290 = vrot.slane %v1289, 4
    %v1291 = vadd.f32 %v1289, %v1290
    %v1292 = vrot.slane %v1291, 2
    %v1293 = vadd.f32 %v1291, %v1292
    %v1294 = vrot.slane %v1293, 1
    %v1295 = vadd.f32 %v1293, %v1294
    %v1296 = vmul.f32 %v1295, %v305
    %v1297 = vadd.f32 %v1296, 1e-05
    %v1298 = vrsqrt.pop %v1297
    %v1299 = vmul.f32 %v1285, %v1298
    %v1300 = vmul.f32 %v1286, %v1298
    %s1301 = scalar_lea.vmem %s7, 2
    %v1302 = vld [vmem:[%s1301] sm:$0x1]
    %v1304 = vlaneseq
    %v1305 = vshrl.u32 %v1304, 7
    %v1306 = vsub.s32 0, %v1305
    %v1307 = vrot.slane %v1302, %v1306
    %v1309 = vmul.f32 %v1299, %v1307
    %v1310 = vmul.f32 %v1300, %v1307
    %s1311 = scalar_lea.vmem %s8, 2
    %v1312 = vld [vmem:[%s1311] sm:$0x1]
    %v1314 = vlaneseq
    %v1315 = vshrl.u32 %v1314, 7
    %v1316 = vsub.s32 0, %v1315
    %v1317 = vrot.slane %v1312, %v1316
    %v1319 = vadd.f32 %v1309, %v1317
    %v1320 = vadd.f32 %v1310, %v1317
    %v1321 = vpack.c.bf16 %v1320, %v1319
    %s1322 = scalar_lea.vmem [#allocation7], 128
    %v1323 = vld [vmem:[%s1322] sm:$0xf]
    %v1324 = vld [vmem:[%s1322 + $0x4] sm:$0xf]
    %v1325 = vld [vmem:[%s1322 + $0x8] sm:$0xf]
    %v1326 = vld [vmem:[%s1322 + $0xc] sm:$0xf]
    %v1327 = vld [vmem:[%s1322 + $0x10] sm:$0xf]
    %v1328 = vld [vmem:[%s1322 + $0x14] sm:$0xf]
    %v1329 = vld [vmem:[%s1322 + $0x18] sm:$0xf]
    %v1330 = vld [vmem:[%s1322 + $0x1c] sm:$0xf]
    %v1331 = vld [vmem:[%s1322 + $0x20] sm:$0xf]
    %v1332 = vld [vmem:[%s1322 + $0x24] sm:$0xf]
    %v1333 = vld [vmem:[%s1322 + $0x28] sm:$0xf]
    %v1334 = vld [vmem:[%s1322 + $0x2c] sm:$0xf]
    %v1335 = vld [vmem:[%s1322 + $0x30] sm:$0xf]
    %v1336 = vld [vmem:[%s1322 + $0x34] sm:$0xf]
    %v1337 = vld [vmem:[%s1322 + $0x38] sm:$0xf]
    %v1338 = vld [vmem:[%s1322 + $0x3c] sm:$0xf]
    %v1355 = vunpack.c.l.b16 %v1323
    %v1356 = vunpack.c.l.b16 %v1324
    %v1357 = vunpack.c.l.b16 %v1325
    %v1358 = vunpack.c.l.b16 %v1326
    %v1359 = vunpack.c.l.b16 %v1327
    %v1360 = vunpack.c.l.b16 %v1328
    %v1361 = vunpack.c.l.b16 %v1329
    %v1362 = vunpack.c.l.b16 %v1330
    %v1363 = vunpack.c.l.b16 %v1331
    %v1364 = vunpack.c.l.b16 %v1332
    %v1365 = vunpack.c.l.b16 %v1333
    %v1366 = vunpack.c.l.b16 %v1334
    %v1367 = vunpack.c.l.b16 %v1335
    %v1368 = vunpack.c.l.b16 %v1336
    %v1369 = vunpack.c.l.b16 %v1337
    %v1370 = vunpack.c.l.b16 %v1338
    %v1371 = vpack.c.b16 %v1356, %v1355
    %v1372 = vpack.c.b16 %v1358, %v1357
    %v1373 = vpack.c.b16 %v1360, %v1359
    %v1374 = vpack.c.b16 %v1362, %v1361
    %v1375 = vpack.c.b16 %v1364, %v1363
    %v1376 = vpack.c.b16 %v1366, %v1365
    %v1377 = vpack.c.b16 %v1368, %v1367
    %v1378 = vpack.c.b16 %v1370, %v1369
    %1387 = vmatprep.subr.bf16.mxu0 0
    %1388 = vmatpush1.bf16.msra.mxu0 %v1378
    %1389 = vmatprep.subr.bf16.mxu0 0
    %1390 = vmatpush1.bf16.msra.mxu0 %v1377
    %1391 = vmatprep.subr.bf16.mxu0 0
    %1392 = vmatpush1.bf16.msra.mxu0 %v1376
    %1393 = vmatprep.subr.bf16.mxu0 0
    %1394 = vmatpush1.bf16.msra.mxu0 %v1375
    %1395 = vmatprep.subr.bf16.mxu0 0
    %1396 = vmatpush1.bf16.msra.mxu0 %v1374
    %1397 = vmatprep.subr.bf16.mxu0 0
    %1398 = vmatpush1.bf16.msra.mxu0 %v1373
    %1399 = vmatprep.subr.bf16.mxu0 0
    %1400 = vmatpush1.bf16.msra.mxu0 %v1372
    %1401 = vmatprep.subr.bf16.mxu0 0
    %1402 = vmatpush1.bf16.msra.mxu0 %v1371
    %1403 = vmatprep.subr.bf16.mxu0 0
    %1404 = vmatpush2.bf16.msra.mxu0 0
    %1405 = vmatprep.subr.bf16.mxu0 0
    %1406 = vmatpush2.bf16.msra.mxu0 0
    %1407 = vmatprep.subr.bf16.mxu0 0
    %1408 = vmatpush2.bf16.msra.mxu0 0
    %1409 = vmatprep.subr.bf16.mxu0 0
    %1410 = vmatpush2.bf16.msra.mxu0 0
    %1411 = vmatprep.subr.bf16.mxu0 0
    %1412 = vmatpush2.bf16.msra.mxu0 0
    %1413 = vmatprep.subr.bf16.mxu0 0
    %1414 = vmatpush2.bf16.msra.mxu0 0
    %1415 = vmatprep.subr.bf16.mxu0 0
    %1416 = vmatpush2.bf16.msra.mxu0 0
    %1417 = vmatprep.subr.bf16.mxu0 0
    %1418 = vmatpush2.bf16.msra.mxu0 0
    %1419 = vmatprep.mubr.bf16.mxu0 0
    %1420 = vmatmul.mubr.bf16.gmra.mxu0 %v1321
    %v1421 = vpop.f32.mrf.mxu0
    %v1422 = vadd.f32 0.0, %v1421
    %v1423 = vpop.f32.mrf.mxu0
    %v1424 = vpop.f32.mrf.mxu0
    %v1425 = vadd.f32 0.0, %v1424
    %v1426 = vpop.f32.mrf.mxu0
    %1427 = vdwg.mxu0
    %v1428 = vadd.f32 %v1271, %v1422
    %v1429 = vadd.f32 %v1274, %v1425
    %v1430 = vadd.f32 %v972, %v975
    %v1431 = vrot.slane %v1430, 4
    %v1432 = vadd.f32 %v1430, %v1431
    %v1433 = vrot.slane %v1432, 2
    %v1434 = vadd.f32 %v1432, %v1433
    %v1435 = vrot.slane %v1434, 1
    %v1436 = vadd.f32 %v1434, %v1435
    %v1437 = vmul.f32 %v1436, %v305
    %v1438 = vsub.f32 %v972, %v1437
    %v1439 = vsub.f32 %v975, %v1437
    %v1440 = vmul.f32 %v1438, %v1438
    %v1441 = vmul.f32 %v1439, %v1439
    %v1442 = vadd.f32 %v1440, %v1441
    %v1443 = vrot.slane %v1442, 4
    %v1444 = vadd.f32 %v1442, %v1443
    %v1445 = vrot.slane %v1444, 2
    %v1446 = vadd.f32 %v1444, %v1445
    %v1447 = vrot.slane %v1446, 1
    %v1448 = vadd.f32 %v1446, %v1447
    %v1449 = vmul.f32 %v1448, %v305
    %v1450 = vadd.f32 %v1449, 1e-05
    %v1451 = vrsqrt.pop %v1450
    %v1452 = vmul.f32 %v1438, %v1451
    %v1453 = vmul.f32 %v1439, %v1451
    %s1454 = scalar_lea.vmem %s7, 3
    %v1455 = vld [vmem:[%s1454] sm:$0x1]
    %v1457 = vlaneseq
    %v1458 = vshrl.u32 %v1457, 7
    %v1459 = vsub.s32 0, %v1458
    %v1460 = vrot.slane %v1455, %v1459
    %v1462 = vmul.f32 %v1452, %v1460
    %v1463 = vmul.f32 %v1453, %v1460
    %s1464 = scalar_lea.vmem %s8, 3
    %v1465 = vld [vmem:[%s1464] sm:$0x1]
    %v1467 = vlaneseq
    %v1468 = vshrl.u32 %v1467, 7
    %v1469 = vsub.s32 0, %v1468
    %v1470 = vrot.slane %v1465, %v1469
    %v1472 = vadd.f32 %v1462, %v1470
    %v1473 = vadd.f32 %v1463, %v1470
    %v1474 = vpack.c.bf16 %v1473, %v1472
    %s1475 = scalar_lea.vmem [#allocation7], 192
    %v1476 = vld [vmem:[%s1475] sm:$0xf]
    %v1477 = vld [vmem:[%s1475 + $0x4] sm:$0xf]
    %v1478 = vld [vmem:[%s1475 + $0x8] sm:$0xf]
    %v1479 = vld [vmem:[%s1475 + $0xc] sm:$0xf]
    %v1480 = vld [vmem:[%s1475 + $0x10] sm:$0xf]
    %v1481 = vld [vmem:[%s1475 + $0x14] sm:$0xf]
    %v1482 = vld [vmem:[%s1475 + $0x18] sm:$0xf]
    %v1483 = vld [vmem:[%s1475 + $0x1c] sm:$0xf]
    %v1484 = vld [vmem:[%s1475 + $0x20] sm:$0xf]
    %v1485 = vld [vmem:[%s1475 + $0x24] sm:$0xf]
    %v1486 = vld [vmem:[%s1475 + $0x28] sm:$0xf]
    %v1487 = vld [vmem:[%s1475 + $0x2c] sm:$0xf]
    %v1488 = vld [vmem:[%s1475 + $0x30] sm:$0xf]
    %v1489 = vld [vmem:[%s1475 + $0x34] sm:$0xf]
    %v1490 = vld [vmem:[%s1475 + $0x38] sm:$0xf]
    %v1491 = vld [vmem:[%s1475 + $0x3c] sm:$0xf]
    %v1508 = vunpack.c.l.b16 %v1476
    %v1509 = vunpack.c.l.b16 %v1477
    %v1510 = vunpack.c.l.b16 %v1478
    %v1511 = vunpack.c.l.b16 %v1479
    %v1512 = vunpack.c.l.b16 %v1480
    %v1513 = vunpack.c.l.b16 %v1481
    %v1514 = vunpack.c.l.b16 %v1482
    %v1515 = vunpack.c.l.b16 %v1483
    %v1516 = vunpack.c.l.b16 %v1484
    %v1517 = vunpack.c.l.b16 %v1485
    %v1518 = vunpack.c.l.b16 %v1486
    %v1519 = vunpack.c.l.b16 %v1487
    %v1520 = vunpack.c.l.b16 %v1488
    %v1521 = vunpack.c.l.b16 %v1489
    %v1522 = vunpack.c.l.b16 %v1490
    %v1523 = vunpack.c.l.b16 %v1491
    %v1524 = vpack.c.b16 %v1509, %v1508
    %v1525 = vpack.c.b16 %v1511, %v1510
    %v1526 = vpack.c.b16 %v1513, %v1512
    %v1527 = vpack.c.b16 %v1515, %v1514
    %v1528 = vpack.c.b16 %v1517, %v1516
    %v1529 = vpack.c.b16 %v1519, %v1518
    %v1530 = vpack.c.b16 %v1521, %v1520
    %v1531 = vpack.c.b16 %v1523, %v1522
    %1540 = vmatprep.subr.bf16.mxu0 0
    %1541 = vmatpush1.bf16.msra.mxu0 %v1531
    %1542 = vmatprep.subr.bf16.mxu0 0
    %1543 = vmatpush1.bf16.msra.mxu0 %v1530
    %1544 = vmatprep.subr.bf16.mxu0 0
    %1545 = vmatpush1.bf16.msra.mxu0 %v1529
    %1546 = vmatprep.subr.bf16.mxu0 0
    %1547 = vmatpush1.bf16.msra.mxu0 %v1528
    %1548 = vmatprep.subr.bf16.mxu0 0
    %1549 = vmatpush1.bf16.msra.mxu0 %v1527
    %1550 = vmatprep.subr.bf16.mxu0 0
    %1551 = vmatpush1.bf16.msra.mxu0 %v1526
    %1552 = vmatprep.subr.bf16.mxu0 0
    %1553 = vmatpush1.bf16.msra.mxu0 %v1525
    %1554 = vmatprep.subr.bf16.mxu0 0
    %1555 = vmatpush1.bf16.msra.mxu0 %v1524
    %1556 = vmatprep.subr.bf16.mxu0 0
    %1557 = vmatpush2.bf16.msra.mxu0 0
    %1558 = vmatprep.subr.bf16.mxu0 0
    %1559 = vmatpush2.bf16.msra.mxu0 0
    %1560 = vmatprep.subr.bf16.mxu0 0
    %1561 = vmatpush2.bf16.msra.mxu0 0
    %1562 = vmatprep.subr.bf16.mxu0 0
    %1563 = vmatpush2.bf16.msra.mxu0 0
    %1564 = vmatprep.subr.bf16.mxu0 0
    %1565 = vmatpush2.bf16.msra.mxu0 0
    %1566 = vmatprep.subr.bf16.mxu0 0
    %1567 = vmatpush2.bf16.msra.mxu0 0
    %1568 = vmatprep.subr.bf16.mxu0 0
    %1569 = vmatpush2.bf16.msra.mxu0 0
    %1570 = vmatprep.subr.bf16.mxu0 0
    %1571 = vmatpush2.bf16.msra.mxu0 0
    %1572 = vmatprep.mubr.bf16.mxu0 0
    %1573 = vmatmul.mubr.bf16.gmra.mxu0 %v1474
    %v1574 = vpop.f32.mrf.mxu0
    %v1575 = vadd.f32 0.0, %v1574
    %v1576 = vpop.f32.mrf.mxu0
    %v1577 = vpop.f32.mrf.mxu0
    %v1578 = vadd.f32 0.0, %v1577
    %v1579 = vpop.f32.mrf.mxu0
    %1580 = vdwg.mxu0
    %v1581 = vadd.f32 %v1428, %v1575
    %v1582 = vadd.f32 %v1429, %v1578
    %v1583 = vld [vmem:[%s9] sm:$0x1]
    %v1585 = vlaneseq
    %v1586 = vshrl.u32 %v1585, 7
    %v1587 = vsub.s32 0, %v1586
    %v1588 = vrot.slane %v1583, %v1587
    %v1590 = vadd.f32 %v1581, %v1588
    %v1591 = vadd.f32 %v1582, %v1588
    %1592 = vst [vmem:[#allocation8] sm:$0xff] %v1590
    %1593 = vst [vmem:[#allocation8 + $0x8] sm:$0xff] %v1591
    // Predicated region
    $region54: #{tpu_custom_call.1} parent=1 // pred_check
      _
    $region55: #{tpu_custom_call.1} parent=1 // pred_check_branch
      %1595 = sbr.rel (0) target = $region57
    $region56: #{tpu_custom_call.1} parent=1 // pred_region
      %s1597 = ssub.s32 256, 256
      %1598 = vsyncadd [#allocation4], %s1597
      %s1599 = sshll.u32 [#allocation8], 4
      %s1600 = int_to_ptr.vmem [resolvable:$true] %s1599
      %1605 = dma.vmem_to_hbm [thread:$0]  %s1600, 256, %s10, [#allocation4], 128, 128, 8
    $region57: #{tpu_custom_call.1} parent=1 // pred_fallthru
      _
    // Predicated region
    $region58: #{tpu_custom_call.1} parent=1 // pred_check
      _
    $region59: #{tpu_custom_call.1} parent=1 // pred_check_branch
      %1607 = sbr.rel (0) target = $region61
    $region60: #{tpu_custom_call.1} parent=1 // pred_region
      %1608 = dma.done [#allocation4], 256
    $region61: #{tpu_custom_call.1} parent=1 // pred_fallthru
      _
    %1609 = vsyncpa [#allocation3], 1
    %1610 = vsyncpa [#allocation6], 1
    %1611 = vsyncpa [#allocation4], 1

</llo_original>
